<compile_context>
chip_gen: v7x
topology: tpu7x:2x2x1
jax: 0.10.0
libtpu: 0.0.40
codegen_flags: <defaults>
</compile_context>

<pallas_src>
import math

import jax
import jax.numpy as jnp
from jax.experimental import pallas as pl
from jax.experimental.pallas import tpu as pltpu


HALF_LOG_2PI = 0.5 * math.log(2.0 * math.pi)


# ----------------------------------------------------------------------------
# small helpers
# ----------------------------------------------------------------------------
def _sigmoid(x):
    return 1.0 / (1.0 + jnp.exp(-x))


def _softplus(x):
    # matches torch.nn.Softplus (beta=1, threshold=20)
    return jnp.where(x > 20.0, x, jnp.log1p(jnp.exp(jnp.minimum(x, 20.0))))


def _relu(x):
    return jnp.maximum(x, 0.0)


def _cspec(shape):
    nd = len(shape)
    return pl.BlockSpec(shape, lambda g, _nd=nd: (0,) * _nd)


def _choose_tc(T, cap=8):
    """Largest divisor of T that is <= cap (timesteps per grid iteration)."""
    tc = 1
    for c in range(1, min(T, cap) + 1):
        if T % c == 0:
            tc = c
    return tc


# ----------------------------------------------------------------------------
# weight packing helpers (wrapper side, plain JAX)
# ----------------------------------------------------------------------------
def _block_diag(stack):
    """(D, m, n) stacked matrices -> (D*m, D*n) block-diagonal matrix."""
    Dn, m, n = stack.shape
    eye = jnp.eye(Dn, dtype=stack.dtype)
    return (eye[:, None, :, None] * stack[:, :, None, :]).reshape(Dn * m, Dn * n)


def _flat_out(w):
    """(D, A, M) expert-stacked weight -> (A, D*M), experts along lanes."""
    Dn, A, M = w.shape
    return jnp.transpose(w, (1, 0, 2)).reshape(A, Dn * M)


def _flat_bias(b):
    """(D, 1, M) expert-stacked bias -> (1, D*M)."""
    Dn, _, M = b.shape
    return b.reshape(1, Dn * M)


def pack_step_params(params):
    ztw1h, ztw1z, ztb1, ztw2, ztb2, ztwm, ztbm, ztws, ztbs = params["ztrans"]
    zpw1h, zpw1z, zpb1, zpw2, zpb2, zpwm, zpbm, zpws, zpbs = params["zpost"]
    yew1h, yew1z, yeb1, yew2, yeb2, yewm, yebm, yews, yebs = params["yemis"]
    wd, bd = params["wd"], params["bd"]

    wm_all = jnp.concatenate([ztwm, zpwm], axis=0)   # (2D, Z, Z)
    ws_all = jnp.concatenate([ztws, zpws], axis=0)
    return {
        # hb feeds d-posterior + z-posterior layer 1
        "whb": jnp.concatenate([_flat_out(wd), _flat_out(zpw1h)], axis=1),
        "bhb": jnp.concatenate([_flat_bias(bd), _flat_bias(zpb1)], axis=1),
        # hf feeds z-transition + y-emission layer 1
        "whf": jnp.concatenate([_flat_out(ztw1h), _flat_out(yew1h)], axis=1),
        "bhf": jnp.concatenate([_flat_bias(ztb1), _flat_bias(yeb1)], axis=1),
        # z_prev feeds z-transition + z-posterior layer 1
        "wzp": jnp.concatenate([_flat_out(ztw1z), _flat_out(zpw1z)], axis=1),
        # fused (ztrans | zpost) layer 2 + heads, block diagonal
        "wzz2": _block_diag(jnp.concatenate([ztw2, zpw2], axis=0)),
        "bzz2": jnp.concatenate([_flat_bias(ztb2), _flat_bias(zpb2)], axis=1),
        "wzzh": jnp.concatenate([_block_diag(wm_all), _block_diag(ws_all)], axis=1),
        "bzzh": jnp.concatenate([_flat_bias(ztbm), _flat_bias(zpbm),
                                 _flat_bias(ztbs), _flat_bias(zpbs)], axis=1),
        # y emission
        "wyez": _flat_out(yew1z),
        "wye2": _block_diag(yew2),
        "bye2": _flat_bias(yeb2),
        "wyeh": jnp.concatenate([_block_diag(yewm), _block_diag(yews)], axis=1),
        "byeh": jnp.concatenate([_flat_bias(yebm), _flat_bias(yebs)], axis=1),
    }


def pattern_mats(D, Z, Y):
    """Constant 0/1 matrices: expand per-expert weights to lanes / reduce
    mixtures over experts / cumulative-sum for categorical sampling."""
    def expand(F):                                 # (D, D*F): row i covers block i
        return _block_diag(jnp.ones((D, 1, F), jnp.float32))

    def tile_eye(F):                               # (D*F, F): sums over experts
        return jnp.tile(jnp.eye(F, dtype=jnp.float32), (D, 1))

    ED, EZ, EY = expand(D), expand(Z), expand(Y)
    TD, TZ, TY = tile_eye(D), tile_eye(Z), tile_eye(Y)
    TRIU = jnp.triu(jnp.ones((D, D), jnp.float32))
    return (ED, ED.T, TD, EZ, TZ, EY, TY, TY.T, TRIU)


# ----------------------------------------------------------------------------
# Kernel 1: GRU recurrence (input projection precomputed outside)
# ----------------------------------------------------------------------------
def _make_gru_kernel(Tc, B, H, reverse):
    def kernel(gx_ref, wh_ref, bh_ref, out_ref, h_scr):
        @pl.when(pl.program_id(0) == 0)
        def _():
            h_scr[...] = jnp.zeros((B, H), jnp.float32)

        wh = wh_ref[...]                      # (H, 3H)  [r | z | n]
        bh = bh_ref[...]                      # (1, 3H)

        def step(i, h):
            idx = (Tc - 1 - i) if reverse else i
            gx = gx_ref[idx]                  # (B, 3H) precomputed x @ Wi + bi
            gh = jnp.dot(h, wh, preferred_element_type=jnp.float32) + bh
            r = _sigmoid(gx[:, 0:H] + gh[:, 0:H])
            z = _sigmoid(gx[:, H:2 * H] + gh[:, H:2 * H])
            n = jnp.tanh(gx[:, 2 * H:3 * H] + r * gh[:, 2 * H:3 * H])
            h_new = (1.0 - z) * n + z * h
            out_ref[idx] = h_new
            return h_new

        h_final = jax.lax.fori_loop(0, Tc, step, h_scr[...], unroll=True)
        h_scr[...] = h_final

    return kernel


def gru_recurrence(gx, wh, bh, reverse=False, time_block=8):
    """gx: (T, B, 3H) precomputed input gates. Returns hidden states (T, B, H).

    reverse=True runs the recurrence from t=T-1 down to 0 and writes the
    hidden state obtained after consuming inputs [t..T-1] at output index t
    (i.e. it directly produces flip(GRU(flip(x))) without any flips)."""
    T, B, H3 = gx.shape
    H = H3 // 3
    Tc = _choose_tc(T, time_block)
    G = T // Tc
    if reverse:
        tmap = lambda g: (G - 1 - g, 0, 0)
    else:
        tmap = lambda g: (g, 0, 0)
    return pl.pallas_call(
        _make_gru_kernel(Tc, B, H, reverse),
        grid=(G,),
        in_specs=[pl.BlockSpec((Tc, B, 3 * H), tmap),
                  _cspec((H, 3 * H)),
                  _cspec((1, 3 * H))],
        out_specs=pl.BlockSpec((Tc, B, H), tmap),
        out_shape=jax.ShapeDtypeStruct((T, B, H), jnp.float32),
        scratch_shapes=[pltpu.VMEM((B, H), jnp.float32)],
        compiler_params=pltpu.CompilerParams(dimension_semantics=("arbitrary",)),
    )(gx, wh, bh)


# ----------------------------------------------------------------------------
# Kernel 2: the DSSSM per-timestep recurrence (Tc timesteps per grid step)
# ----------------------------------------------------------------------------
def _make_step_kernel(Tc, B, D, Z, Y, P):
    DD, DZ, DY = D * D, D * Z, D * Y
    P_raw = 2 * D + 3 * Z + 2 * Y

    def kernel(hf_ref, hb_ref, y_ref, nz_ref,
               d0_ref, ltr_ref,
               whb_ref, bhb_ref, whf_ref, bhf_ref, wzp_ref,
               wzz2_ref, bzz2_ref, wzzh_ref, bzzh_ref,
               wyez_ref, wye2_ref, bye2_ref, wyeh_ref, byeh_ref,
               ed_ref, edt_ref, td_ref, ez_ref, tz_ref,
               ey_ref, ty_ref, tyt_ref, triu_ref,
               slab_o, loss_o,
               z_scr, d_scr, dp_scr):
        g = pl.program_id(0)

        @pl.when(g == 0)
        def _():
            z_scr[...] = jnp.zeros((B, Z), jnp.float32)
            d_scr[...] = d0_ref[...]
            dp_scr[...] = jnp.full((B, D), 1.0 / D, jnp.float32)
            loss_o[...] = jnp.zeros((1, 128), jnp.float32)

        # hoisted constant loads (once per grid step)
        ltr = ltr_ref[...]                    # (1, D*D) log of Transition rows
        whb = whb_ref[...]; bhb = bhb_ref[...]
        whf = whf_ref[...]; bhf = bhf_ref[...]
        wzp = wzp_ref[...]
        wzz2 = wzz2_ref[...]; bzz2 = bzz2_ref[...]
        wzzh = wzzh_ref[...]; bzzh = bzzh_ref[...]
        wyez = wyez_ref[...]
        wye2 = wye2_ref[...]; bye2 = bye2_ref[...]
        wyeh = wyeh_ref[...]; byeh = byeh_ref[...]
        ED = ed_ref[...]; EDt = edt_ref[...]; TD = td_ref[...]
        EZ = ez_ref[...]; TZ = tz_ref[...]
        EY = ey_ref[...]; TY = ty_ref[...]; TYt = tyt_ref[...]
        TRIU = triu_ref[...]

        def mm(a, w):
            return jnp.dot(a, w, preferred_element_type=jnp.float32)

        def step(i, carry):
            z_prev, d_prev, dpost_prev, kldg, kldc, nll = carry
            hf = hf_ref[i]                    # output_forward[t]          (B, H)
            hb = hb_ref[i]                    # output_backward[T-1-t]     (B, H)
            y_t = y_ref[i]                    # (B, Y)
            nz = nz_ref[i]                    # (B, 1+Z)  [uniform | normal noise]
            u = nz[:, 0:1]
            eps = nz[:, 1:1 + Z]

            # ---- fused first-layer projections (one dot per source) ----
            hb_act = mm(hb, whb) + bhb        # (B, DD+DZ): [dpost logits | zpost L1]
            hf_act = mm(hf, whf) + bhf        # (B, DZ+DY): [ztrans L1 | yemis L1]
            zp_act = mm(z_prev, wzp)          # (B, 2DZ) : [ztrans L1 | zpost L1]

            # ---- d-posterior experts (per-block softmax) & mixture ----
            logits = hb_act[:, 0:DD]
            mrow = jnp.max(logits, axis=1, keepdims=True)   # per-row const => per-block ok
            e = jnp.exp(logits - mrow)
            denom = mm(mm(e, EDt), ED)        # block sums broadcast back to lanes
            dpost_flat = e / denom            # (B, DD), expert-major blocks of D
            wprev = mm(d_prev, ED)            # d_prev expanded to D lanes / expert
            d_post_mix = mm(dpost_flat * wprev, TD)         # (B, D)

            # ---- sample d_t ~ Categorical(d_post_mix) via inverse CDF ----
            cum = mm(d_post_mix, TRIU)
            idx = jnp.sum((u >= cum).astype(jnp.float32), axis=1, keepdims=True)
            idx = jnp.minimum(idx, float(D - 1))
            lane = jax.lax.broadcasted_iota(jnp.float32, (B, D), 1)
            d_new = (jnp.abs(lane - idx) < 0.5).astype(jnp.float32)   # one-hot

            # ---- z transition (prior) + z posterior experts, fully fused ----
            zz_pre = jnp.concatenate(
                [hf_act[:, 0:DZ] + zp_act[:, 0:DZ],
                 hb_act[:, DD:DD + DZ] + zp_act[:, DZ:2 * DZ]], axis=1)
            l1 = _relu(zz_pre)                               # (B, 2DZ)
            l2 = _relu(mm(l1, wzz2) + bzz2)                  # (B, 2DZ)
            ho = mm(l2, wzzh) + bzzh                         # (B, 4DZ)
            pm = ho[:, 0:DZ]                                 # prior means
            qm = ho[:, DZ:2 * DZ]                            # posterior means
            ps = _softplus(ho[:, 2 * DZ:3 * DZ])             # prior stds
            qs = _softplus(ho[:, 3 * DZ:4 * DZ])             # posterior stds

            wz = mm(d_new, EZ)
            z_post_mean = mm(qm * wz, TZ)                    # (B, Z)
            z_post_std = mm(qs * wz, TZ)
            z_new = eps * z_post_std + z_post_mean           # reparameterized sample

            # gaussian KL per expert, weighted by d_post_mix
            wpz = mm(d_post_mix, EZ)
            ps_c = jnp.maximum(ps, 1e-20)
            qs_c = jnp.maximum(qs, 1e-20)
            inv_ps2 = pl.reciprocal(ps_c * ps_c, approx=True)
            kld_el = 0.5 * (2.0 * jnp.log(ps_c) - 2.0 * jnp.log(qs_c)
                            + (qs * qs + (qm - pm) ** 2) * inv_ps2 - 1.0)
            kldg = kldg + jnp.sum(kld_el * wpz)

            # categorical KL per expert vs Transition rows, weighted by prev posterior
            dpc = jnp.maximum(dpost_flat, 1e-30)
            klc = mm((jnp.log(dpc) - ltr) * dpost_flat, EDt)  # (B, D)
            kldc = kldc + jnp.sum(klc * dpost_prev)

            # ---- y emission experts (use freshly sampled z_new) ----
            ye_pre = _relu(hf_act[:, DZ:DZ + DY] + mm(z_new, wyez))
            e2 = _relu(mm(ye_pre, wye2) + bye2)
            yo = mm(e2, wyeh) + byeh                         # (B, 2DY)
            em = yo[:, 0:DY]
            es = _softplus(yo[:, DY:2 * DY])

            wy = mm(d_new, EY)
            y_mean = mm(em * wy, TY)
            y_std = mm(es * wy, TY)

            wpy = mm(d_post_mix, EY)
            es_c = jnp.maximum(es, 1e-20)
            inv_2es2 = pl.reciprocal(2.0 * es_c * es_c, approx=True)
            y_rep = mm(y_t, TYt)                             # y tiled per expert
            nll_el = HALF_LOG_2PI + jnp.log(es_c) + (y_rep - em) ** 2 * inv_2es2
            nll = nll + jnp.sum(nll_el * wpy)

            # ---- lane-dense packed per-step outputs (single full-width store) ----
            pieces = [d_post_mix, d_new, z_post_mean, z_post_std, z_new,
                      y_mean, y_std]
            if P > P_raw:
                pieces.append(jnp.zeros((B, P - P_raw), jnp.float32))
            slab_o[i] = jnp.concatenate(pieces, axis=1)

            return (z_new, d_new, d_post_mix, kldg, kldc, nll)

        carry0 = (z_scr[...], d_scr[...], dp_scr[...],
                  jnp.zeros((), jnp.float32), jnp.zeros((), jnp.float32),
                  jnp.zeros((), jnp.float32))
        z_f, d_f, dp_f, kg, kc, nl = jax.lax.fori_loop(0, Tc, step, carry0)

        # carry state to next grid step
        z_scr[...] = z_f
        d_scr[...] = d_f
        dp_scr[...] = dp_f

        # loss accumulation: one resident-output update per grid step
        lane128 = jax.lax.broadcasted_iota(jnp.int32, (1, 128), 1)
        delta = (jnp.where(lane128 == 0, kg, 0.0)
                 + jnp.where(lane128 == 1, kc, 0.0)
                 + jnp.where(lane128 == 2, nl, 0.0))
        loss_o[...] = loss_o[...] + delta

    return kernel


def dsssm_step_scan(out_fwd, hb_seq, y, noise, d0, log_tr, packed, pats, dims,
                    time_block=8):
    B, D, H, Z, Y = dims
    T = out_fwd.shape[0]
    Tc = _choose_tc(T, time_block)
    G = T // Tc
    P_raw = 2 * D + 3 * Z + 2 * Y
    P = ((P_raw + 127) // 128) * 128

    const_args = [d0, log_tr,
                  packed["whb"], packed["bhb"], packed["whf"], packed["bhf"],
                  packed["wzp"],
                  packed["wzz2"], packed["bzz2"], packed["wzzh"], packed["bzzh"],
                  packed["wyez"], packed["wye2"], packed["bye2"],
                  packed["wyeh"], packed["byeh"],
                  *pats]

    tmap = lambda g: (g, 0, 0)
    in_specs = ([pl.BlockSpec((Tc, B, H), tmap),
                 pl.BlockSpec((Tc, B, H), tmap),
                 pl.BlockSpec((Tc, B, Y), tmap),
                 pl.BlockSpec((Tc, B, Z + 1), tmap)]
                + [_cspec(c.shape) for c in const_args])

    out_shape = (jax.ShapeDtypeStruct((T, B, P), jnp.float32),   # packed per-step slab
                 jax.ShapeDtypeStruct((1, 128), jnp.float32))    # [kldg, kldc, nll, 0...]
    out_specs = (pl.BlockSpec((Tc, B, P), tmap), _cspec((1, 128)))

    return pl.pallas_call(
        _make_step_kernel(Tc, B, D, Z, Y, P),
        grid=(G,),
        in_specs=in_specs,
        out_specs=out_specs,
        out_shape=out_shape,
        scratch_shapes=[pltpu.VMEM((B, Z), jnp.float32),
                        pltpu.VMEM((B, D), jnp.float32),
                        pltpu.VMEM((B, D), jnp.float32)],
        compiler_params=pltpu.CompilerParams(dimension_semantics=("arbitrary",)),
    )(out_fwd, hb_seq, y, noise, *const_args)


# ----------------------------------------------------------------------------
# Parameter initialization (mimics nn.Linear / nn.GRU U(-k, k))
# ----------------------------------------------------------------------------
def _uinit(key, shape, bound):
    return jax.random.uniform(key, shape, jnp.float32, -bound, bound)


def init_gru(key, in_dim, H):
    kb = 1.0 / math.sqrt(H)
    k = jax.random.split(key, 4)
    return {"wi": _uinit(k[0], (in_dim, 3 * H), kb),   # gates ordered [r | z | n]
            "wh": _uinit(k[1], (H, 3 * H), kb),
            "bi": _uinit(k[2], (1, 3 * H), kb),
            "bh": _uinit(k[3], (1, 3 * H), kb)}


def init_family(key, D, H, Z, M):
    """One expert family (stacked over D experts): Linear(H+Z, M)+ReLU,
    Linear(M, M)+ReLU, mean Linear(M, M), std Linear(M, M)+Softplus."""
    k = jax.random.split(key, 9)
    b1 = 1.0 / math.sqrt(H + Z)
    b2 = 1.0 / math.sqrt(M)
    return (_uinit(k[0], (D, H, M), b1),   # w1h
            _uinit(k[1], (D, Z, M), b1),   # w1z
            _uinit(k[2], (D, 1, M), b1),   # b1
            _uinit(k[3], (D, M, M), b2),   # w2
            _uinit(k[4], (D, 1, M), b2),   # b2
            _uinit(k[5], (D, M, M), b2),   # wm
            _uinit(k[6], (D, 1, M), b2),   # bm
            _uinit(k[7], (D, M, M), b2),   # ws
            _uinit(k[8], (D, 1, M), b2))   # bs


def init_params(key, x_dim, y_dim, h_dim, z_dim, d_dim):
    keys = jax.random.split(key, 8)
    kh = 1.0 / math.sqrt(h_dim)
    kd = 1.0 / math.sqrt(d_dim)
    return {
        "dprior_W": _uinit(keys[0], (d_dim, d_dim), kd),
        "dprior_b": _uinit(keys[1], (d_dim,), kd),
        "wd": _uinit(keys[2], (d_dim, h_dim, d_dim), kh),
        "bd": _uinit(keys[3], (d_dim, 1, d_dim), kh),
        "ztrans": init_family(keys[4], d_dim, h_dim, z_dim, z_dim),
        "zpost": init_family(keys[5], d_dim, h_dim, z_dim, z_dim),
        "yemis": init_family(keys[6], d_dim, h_dim, z_dim, y_dim),
        "gru_f": init_gru(jax.random.fold_in(keys[7], 0), x_dim, h_dim),
        "gru_b": init_gru(jax.random.fold_in(keys[7], 1), y_dim + h_dim, h_dim),
    }


# ----------------------------------------------------------------------------
# Full forward pass (mirrors DSSSM.forward; bidirection=False, n_layers=1)
# ----------------------------------------------------------------------------
def dsssm_forward(params, x, y, key, d_dim, z_dim):
    T, B, _ = x.shape
    H = params["gru_f"]["wh"].shape[0]
    Y = y.shape[-1]
    D, Z = d_dim, z_dim

    # Transition matrix (dataname is None branch): softmax(Linear(T0)) / 2 + I / 2
    t_init = (jnp.eye(D, dtype=jnp.float32) * (1.0 - 0.05 * D)
              + jnp.ones((D, D), jnp.float32) * 0.05)
    logits = t_init @ params["dprior_W"] + params["dprior_b"]
    transition = jax.nn.softmax(logits, axis=1) / 2.0 + jnp.eye(D, dtype=jnp.float32) / 2.0
    log_tr = jnp.log(transition).reshape(1, D * D)   # only log(T) is needed in-kernel

    # --- GRU input projections hoisted out of the recurrence (big parallel matmuls)
    gf = params["gru_f"]
    gxf = jnp.einsum("tbi,ih->tbh", x, gf["wi"]) + gf["bi"]
    out_fwd = gru_recurrence(gxf, gf["wh"], gf["bh"], reverse=False)      # (T, B, H)

    gb = params["gru_b"]
    w_y, w_hf = gb["wi"][:Y], gb["wi"][Y:]           # split cat([y, out_fwd]) weights
    gxb = (jnp.einsum("tby,yk->tbk", y, w_y)
           + jnp.einsum("tbh,hk->tbk", out_fwd, w_hf) + gb["bi"])
    # reverse handled via index_map; hb_seq[t] == output_backward[T-1-t]
    hb_seq = gru_recurrence(gxb, gb["wh"], gb["bh"], reverse=True)        # (T, B, H)

    # randomness (deterministic via jax.random; streamed into the kernel)
    k0, ku, ke = jax.random.split(key, 3)
    d0_idx = jax.random.randint(k0, (B,), 0, D)
    d0 = jax.nn.one_hot(d0_idx, D, dtype=jnp.float32)
    u = jax.random.uniform(ku, (T, B, 1), jnp.float32)
    eps = jax.random.normal(ke, (T, B, Z), jnp.float32)
    noise = jnp.concatenate([u, eps], axis=2)        # (T, B, 1+Z)

    packed = pack_step_params(params)
    pats = pattern_mats(D, Z, Y)

    slab, loss = dsssm_step_scan(out_fwd, hb_seq, y, noise, d0, log_tr,
                                 packed, pats, (B, D, H, Z, Y))

    # unpack the lane-dense per-step slab
    offs = [0]
    def take(n):
        s = slab[:, :, offs[0]:offs[0] + n]
        offs[0] += n
        return s
    dpost = take(D); donehot = take(D)
    zmean = take(Z); zstd = take(Z); zt = take(Z)
    ymean = take(Y); ystd = take(Y)

    kldg, kldc, nll = loss[0, 0], loss[0, 1], loss[0, 2]

    z0 = jnp.zeros((1, B, Z), jnp.float32)
    dpost0 = jnp.full((1, B, D), 1.0 / D, jnp.float32)

    all_z_posterior_mean = jnp.concatenate([z0, zmean], axis=0)
    all_z_posterior_std = jnp.concatenate([z0, zstd], axis=0)
    all_z_t_sampled = jnp.concatenate([z0, zt], axis=0)
    all_d_posterior = jnp.concatenate([dpost0, dpost], axis=0)
    all_d_t_sampled = jnp.concatenate([d0[None], donehot], axis=0)
    all_d_t_sampled_plot = jnp.argmax(all_d_t_sampled, axis=-1)[..., None]

    return (kldg, kldc, nll,
            (all_z_posterior_mean, all_z_posterior_std),
            (ymean, ystd),
            all_d_t_sampled_plot,
            all_z_t_sampled,
            all_d_posterior,
            all_d_t_sampled)


# ----------------------------------------------------------------------------
if __name__ == "__main__":
    X_DIM, Y_DIM, H_DIM, Z_DIM, D_DIM = 6, 5, 16, 8, 3
    T, B = 8, 4   # seq len, batch

    root = jax.random.PRNGKey(0)
    k_param, k_x, k_y, k_rng = jax.random.split(root, 4)

    params = init_params(k_param, X_DIM, Y_DIM, H_DIM, Z_DIM, D_DIM)
    x = jax.random.normal(k_x, (T, B, X_DIM), jnp.float32)
    y = jax.random.normal(k_y, (T, B, Y_DIM), jnp.float32)

    outputs = dsssm_forward(params, x, y, k_rng, D_DIM, Z_DIM)
    outputs = jax.block_until_ready(outputs)

    kldg, kldc, nll = outputs[0], outputs[1], outputs[2]
    assert jnp.isfinite(kldg) and jnp.isfinite(kldc) and jnp.isfinite(nll)
    assert outputs[3][0].shape == (T + 1, B, Z_DIM)
    assert outputs[4][0].shape == (T, B, Y_DIM)
    print("KERNEL_OK")
</pallas_src>

<mosaic_0001>
module attributes {stable_mosaic.version = 11 : i64} {
  func.func @kernel(%arg0: i32, %arg1: memref<8x4x48xf32, #tpu.memory_space<vmem>>, %arg2: memref<16x48xf32, #tpu.memory_space<vmem>>, %arg3: memref<1x48xf32, #tpu.memory_space<vmem>>, %arg4: memref<8x4x16xf32, #tpu.memory_space<vmem>>, %arg5: memref<4x16xf32, #tpu.memory_space<vmem>>) attributes {dimension_semantics = [#tpu.dimension_semantics<arbitrary>], iteration_bounds = array<i64: 1>, scalar_prefetch = 0 : i64, scratch_operands = 1 : i64, tpu.core_type = #tpu.core_type<tc>, window_params = [{transform_indices = @transform_0, window_bounds = array<i64: 8, 4, 48>}, {pipeline_mode = #tpu.pipeline_mode<synchronous>, transform_indices = @transform_1, window_bounds = array<i64: 16, 48>}, {pipeline_mode = #tpu.pipeline_mode<synchronous>, transform_indices = @transform_2, window_bounds = array<i64: 1, 48>}, {transform_indices = @transform_3, window_bounds = array<i64: 8, 4, 16>}]} {
    %c0_i32 = arith.constant 0 : i32
    %0 = arith.cmpi eq, %arg0, %c0_i32 : i32
    %1 = arith.extui %0 : i1 to i32
    %c0_i32_0 = arith.constant 0 : i32
    %2 = arith.cmpi ne, %1, %c0_i32_0 : i32
    scf.if %2 {
      %cst_104 = arith.constant 0.000000e+00 : f32
      %327 = vector.broadcast %cst_104 : f32 to vector<4x16xf32>
      %c0_105 = arith.constant 0 : index
      %c0_106 = arith.constant 0 : index
      %328 = vector.load %arg5[%c0_105, %c0_106] : memref<4x16xf32, #tpu.memory_space<vmem>>, vector<4x16xf32>
      tpu.vector_store %arg5[%c0_105, %c0_106], %327 {strides = array<i32>} : memref<4x16xf32, #tpu.memory_space<vmem>>, vector<4x16xf32>,
    } else {
    }
    %c0 = arith.constant 0 : index
    %c0_1 = arith.constant 0 : index
    %3 = vector.load %arg2[%c0, %c0_1] : memref<16x48xf32, #tpu.memory_space<vmem>>, vector<16x48xf32>
    %c0_2 = arith.constant 0 : index
    %c0_3 = arith.constant 0 : index
    %4 = vector.load %arg3[%c0_2, %c0_3] : memref<1x48xf32, #tpu.memory_space<vmem>>, vector<1x48xf32>
    %c0_4 = arith.constant 0 : index
    %c0_5 = arith.constant 0 : index
    %5 = vector.load %arg5[%c0_4, %c0_5] : memref<4x16xf32, #tpu.memory_space<vmem>>, vector<4x16xf32>
    %c0_i32_6 = arith.constant 0 : i32
    %6 = arith.index_cast %c0_i32_6 : i32 to index
    %c0_7 = arith.constant 0 : index
    %c0_8 = arith.constant 0 : index
    %7 = vector.load %arg1[%6, %c0_7, %c0_8] : memref<8x4x48xf32, #tpu.memory_space<vmem>>, vector<1x4x48xf32>
    %8 = vector.shape_cast %7 : vector<1x4x48xf32> to vector<4x48xf32>
    %cst = arith.constant dense<0.000000e+00> : vector<4x48xf32>
    %9 = tpu.matmul %5, %3, %cst {dimension_numbers = #tpu.dot_dimension_numbers<[1], [0], [0], [1], [0, 0, 1, 1], [], []>} : vector<4x16xf32>, vector<16x48xf32>, vector<4x48xf32> -> vector<4x48xf32>
    %10 = vector.broadcast %4 : vector<1x48xf32> to vector<4x48xf32>
    %11 = arith.addf %9, %10 : vector<4x48xf32>
    %12 = vector.extract_strided_slice %8 {offsets = [0, 0], sizes = [4, 16], strides = [1, 1]} : vector<4x48xf32> to vector<4x16xf32>
    %13 = vector.extract_strided_slice %11 {offsets = [0, 0], sizes = [4, 16], strides = [1, 1]} : vector<4x48xf32> to vector<4x16xf32>
    %14 = arith.addf %12, %13 : vector<4x16xf32>
    %cst_9 = arith.constant 0.000000e+00 : f32
    %15 = vector.broadcast %cst_9 : f32 to vector<4x16xf32>
    %16 = arith.subf %15, %14 : vector<4x16xf32>
    %17 = math.exp %16 : vector<4x16xf32>
    %cst_10 = arith.constant 1.000000e+00 : f32
    %18 = vector.broadcast %cst_10 : f32 to vector<4x16xf32>
    %19 = arith.addf %18, %17 : vector<4x16xf32>
    %cst_11 = arith.constant 1.000000e+00 : f32
    %20 = vector.broadcast %cst_11 : f32 to vector<4x16xf32>
    %21 = arith.divf %20, %19 : vector<4x16xf32>
    %22 = vector.extract_strided_slice %8 {offsets = [0, 16], sizes = [4, 16], strides = [1, 1]} : vector<4x48xf32> to vector<4x16xf32>
    %23 = vector.extract_strided_slice %11 {offsets = [0, 16], sizes = [4, 16], strides = [1, 1]} : vector<4x48xf32> to vector<4x16xf32>
    %24 = arith.addf %22, %23 : vector<4x16xf32>
    %cst_12 = arith.constant 0.000000e+00 : f32
    %25 = vector.broadcast %cst_12 : f32 to vector<4x16xf32>
    %26 = arith.subf %25, %24 : vector<4x16xf32>
    %27 = math.exp %26 : vector<4x16xf32>
    %cst_13 = arith.constant 1.000000e+00 : f32
    %28 = vector.broadcast %cst_13 : f32 to vector<4x16xf32>
    %29 = arith.addf %28, %27 : vector<4x16xf32>
    %cst_14 = arith.constant 1.000000e+00 : f32
    %30 = vector.broadcast %cst_14 : f32 to vector<4x16xf32>
    %31 = arith.divf %30, %29 : vector<4x16xf32>
    %32 = vector.extract_strided_slice %8 {offsets = [0, 32], sizes = [4, 16], strides = [1, 1]} : vector<4x48xf32> to vector<4x16xf32>
    %33 = vector.extract_strided_slice %11 {offsets = [0, 32], sizes = [4, 16], strides = [1, 1]} : vector<4x48xf32> to vector<4x16xf32>
    %34 = arith.mulf %21, %33 : vector<4x16xf32>
    %35 = arith.addf %32, %34 : vector<4x16xf32>
    %36 = math.tanh %35 : vector<4x16xf32>
    %cst_15 = arith.constant 1.000000e+00 : f32
    %37 = vector.broadcast %cst_15 : f32 to vector<4x16xf32>
    %38 = arith.subf %37, %31 : vector<4x16xf32>
    %39 = arith.mulf %38, %36 : vector<4x16xf32>
    %40 = arith.mulf %31, %5 : vector<4x16xf32>
    %41 = arith.addf %39, %40 : vector<4x16xf32>
    %42 = arith.index_cast %c0_i32_6 : i32 to index
    %c0_16 = arith.constant 0 : index
    %c0_17 = arith.constant 0 : index
    %43 = vector.load %arg4[%42, %c0_16, %c0_17] : memref<8x4x16xf32, #tpu.memory_space<vmem>>, vector<1x4x16xf32>
    %44 = vector.shape_cast %43 : vector<1x4x16xf32> to vector<4x16xf32>
    %45 = vector.shape_cast %41 : vector<4x16xf32> to vector<1x4x16xf32>
    tpu.vector_store %arg4[%42, %c0_16, %c0_17], %45 {strides = array<i32>} : memref<8x4x16xf32, #tpu.memory_space<vmem>>, vector<1x4x16xf32>,
    %c1_i32 = arith.constant 1 : i32
    %46 = arith.index_cast %c1_i32 : i32 to index
    %c0_18 = arith.constant 0 : index
    %c0_19 = arith.constant 0 : index
    %47 = vector.load %arg1[%46, %c0_18, %c0_19] : memref<8x4x48xf32, #tpu.memory_space<vmem>>, vector<1x4x48xf32>
    %48 = vector.shape_cast %47 : vector<1x4x48xf32> to vector<4x48xf32>
    %cst_20 = arith.constant dense<0.000000e+00> : vector<4x48xf32>
    %49 = tpu.matmul %41, %3, %cst_20 {dimension_numbers = #tpu.dot_dimension_numbers<[1], [0], [0], [1], [0, 0, 1, 1], [], []>} : vector<4x16xf32>, vector<16x48xf32>, vector<4x48xf32> -> vector<4x48xf32>
    %50 = vector.broadcast %4 : vector<1x48xf32> to vector<4x48xf32>
    %51 = arith.addf %49, %50 : vector<4x48xf32>
    %52 = vector.extract_strided_slice %48 {offsets = [0, 0], sizes = [4, 16], strides = [1, 1]} : vector<4x48xf32> to vector<4x16xf32>
    %53 = vector.extract_strided_slice %51 {offsets = [0, 0], sizes = [4, 16], strides = [1, 1]} : vector<4x48xf32> to vector<4x16xf32>
    %54 = arith.addf %52, %53 : vector<4x16xf32>
    %cst_21 = arith.constant 0.000000e+00 : f32
    %55 = vector.broadcast %cst_21 : f32 to vector<4x16xf32>
    %56 = arith.subf %55, %54 : vector<4x16xf32>
    %57 = math.exp %56 : vector<4x16xf32>
    %cst_22 = arith.constant 1.000000e+00 : f32
    %58 = vector.broadcast %cst_22 : f32 to vector<4x16xf32>
    %59 = arith.addf %58, %57 : vector<4x16xf32>
    %cst_23 = arith.constant 1.000000e+00 : f32
    %60 = vector.broadcast %cst_23 : f32 to vector<4x16xf32>
    %61 = arith.divf %60, %59 : vector<4x16xf32>
    %62 = vector.extract_strided_slice %48 {offsets = [0, 16], sizes = [4, 16], strides = [1, 1]} : vector<4x48xf32> to vector<4x16xf32>
    %63 = vector.extract_strided_slice %51 {offsets = [0, 16], sizes = [4, 16], strides = [1, 1]} : vector<4x48xf32> to vector<4x16xf32>
    %64 = arith.addf %62, %63 : vector<4x16xf32>
    %cst_24 = arith.constant 0.000000e+00 : f32
    %65 = vector.broadcast %cst_24 : f32 to vector<4x16xf32>
    %66 = arith.subf %65, %64 : vector<4x16xf32>
    %67 = math.exp %66 : vector<4x16xf32>
    %cst_25 = arith.constant 1.000000e+00 : f32
    %68 = vector.broadcast %cst_25 : f32 to vector<4x16xf32>
    %69 = arith.addf %68, %67 : vector<4x16xf32>
    %cst_26 = arith.constant 1.000000e+00 : f32
    %70 = vector.broadcast %cst_26 : f32 to vector<4x16xf32>
    %71 = arith.divf %70, %69 : vector<4x16xf32>
    %72 = vector.extract_strided_slice %48 {offsets = [0, 32], sizes = [4, 16], strides = [1, 1]} : vector<4x48xf32> to vector<4x16xf32>
    %73 = vector.extract_strided_slice %51 {offsets = [0, 32], sizes = [4, 16], strides = [1, 1]} : vector<4x48xf32> to vector<4x16xf32>
    %74 = arith.mulf %61, %73 : vector<4x16xf32>
    %75 = arith.addf %72, %74 : vector<4x16xf32>
    %76 = math.tanh %75 : vector<4x16xf32>
    %cst_27 = arith.constant 1.000000e+00 : f32
    %77 = vector.broadcast %cst_27 : f32 to vector<4x16xf32>
    %78 = arith.subf %77, %71 : vector<4x16xf32>
    %79 = arith.mulf %78, %76 : vector<4x16xf32>
    %80 = arith.mulf %71, %41 : vector<4x16xf32>
    %81 = arith.addf %79, %80 : vector<4x16xf32>
    %82 = arith.index_cast %c1_i32 : i32 to index
    %c0_28 = arith.constant 0 : index
    %c0_29 = arith.constant 0 : index
    %83 = vector.load %arg4[%82, %c0_28, %c0_29] : memref<8x4x16xf32, #tpu.memory_space<vmem>>, vector<1x4x16xf32>
    %84 = vector.shape_cast %83 : vector<1x4x16xf32> to vector<4x16xf32>
    %85 = vector.shape_cast %81 : vector<4x16xf32> to vector<1x4x16xf32>
    tpu.vector_store %arg4[%82, %c0_28, %c0_29], %85 {strides = array<i32>} : memref<8x4x16xf32, #tpu.memory_space<vmem>>, vector<1x4x16xf32>,
    %c2_i32 = arith.constant 2 : i32
    %86 = arith.index_cast %c2_i32 : i32 to index
    %c0_30 = arith.constant 0 : index
    %c0_31 = arith.constant 0 : index
    %87 = vector.load %arg1[%86, %c0_30, %c0_31] : memref<8x4x48xf32, #tpu.memory_space<vmem>>, vector<1x4x48xf32>
    %88 = vector.shape_cast %87 : vector<1x4x48xf32> to vector<4x48xf32>
    %cst_32 = arith.constant dense<0.000000e+00> : vector<4x48xf32>
    %89 = tpu.matmul %81, %3, %cst_32 {dimension_numbers = #tpu.dot_dimension_numbers<[1], [0], [0], [1], [0, 0, 1, 1], [], []>} : vector<4x16xf32>, vector<16x48xf32>, vector<4x48xf32> -> vector<4x48xf32>
    %90 = vector.broadcast %4 : vector<1x48xf32> to vector<4x48xf32>
    %91 = arith.addf %89, %90 : vector<4x48xf32>
    %92 = vector.extract_strided_slice %88 {offsets = [0, 0], sizes = [4, 16], strides = [1, 1]} : vector<4x48xf32> to vector<4x16xf32>
    %93 = vector.extract_strided_slice %91 {offsets = [0, 0], sizes = [4, 16], strides = [1, 1]} : vector<4x48xf32> to vector<4x16xf32>
    %94 = arith.addf %92, %93 : vector<4x16xf32>
    %cst_33 = arith.constant 0.000000e+00 : f32
    %95 = vector.broadcast %cst_33 : f32 to vector<4x16xf32>
    %96 = arith.subf %95, %94 : vector<4x16xf32>
    %97 = math.exp %96 : vector<4x16xf32>
    %cst_34 = arith.constant 1.000000e+00 : f32
    %98 = vector.broadcast %cst_34 : f32 to vector<4x16xf32>
    %99 = arith.addf %98, %97 : vector<4x16xf32>
    %cst_35 = arith.constant 1.000000e+00 : f32
    %100 = vector.broadcast %cst_35 : f32 to vector<4x16xf32>
    %101 = arith.divf %100, %99 : vector<4x16xf32>
    %102 = vector.extract_strided_slice %88 {offsets = [0, 16], sizes = [4, 16], strides = [1, 1]} : vector<4x48xf32> to vector<4x16xf32>
    %103 = vector.extract_strided_slice %91 {offsets = [0, 16], sizes = [4, 16], strides = [1, 1]} : vector<4x48xf32> to vector<4x16xf32>
    %104 = arith.addf %102, %103 : vector<4x16xf32>
    %cst_36 = arith.constant 0.000000e+00 : f32
    %105 = vector.broadcast %cst_36 : f32 to vector<4x16xf32>
    %106 = arith.subf %105, %104 : vector<4x16xf32>
    %107 = math.exp %106 : vector<4x16xf32>
    %cst_37 = arith.constant 1.000000e+00 : f32
    %108 = vector.broadcast %cst_37 : f32 to vector<4x16xf32>
    %109 = arith.addf %108, %107 : vector<4x16xf32>
    %cst_38 = arith.constant 1.000000e+00 : f32
    %110 = vector.broadcast %cst_38 : f32 to vector<4x16xf32>
    %111 = arith.divf %110, %109 : vector<4x16xf32>
    %112 = vector.extract_strided_slice %88 {offsets = [0, 32], sizes = [4, 16], strides = [1, 1]} : vector<4x48xf32> to vector<4x16xf32>
    %113 = vector.extract_strided_slice %91 {offsets = [0, 32], sizes = [4, 16], strides = [1, 1]} : vector<4x48xf32> to vector<4x16xf32>
    %114 = arith.mulf %101, %113 : vector<4x16xf32>
    %115 = arith.addf %112, %114 : vector<4x16xf32>
    %116 = math.tanh %115 : vector<4x16xf32>
    %cst_39 = arith.constant 1.000000e+00 : f32
    %117 = vector.broadcast %cst_39 : f32 to vector<4x16xf32>
    %118 = arith.subf %117, %111 : vector<4x16xf32>
    %119 = arith.mulf %118, %116 : vector<4x16xf32>
    %120 = arith.mulf %111, %81 : vector<4x16xf32>
    %121 = arith.addf %119, %120 : vector<4x16xf32>
    %122 = arith.index_cast %c2_i32 : i32 to index
    %c0_40 = arith.constant 0 : index
    %c0_41 = arith.constant 0 : index
    %123 = vector.load %arg4[%122, %c0_40, %c0_41] : memref<8x4x16xf32, #tpu.memory_space<vmem>>, vector<1x4x16xf32>
    %124 = vector.shape_cast %123 : vector<1x4x16xf32> to vector<4x16xf32>
    %125 = vector.shape_cast %121 : vector<4x16xf32> to vector<1x4x16xf32>
    tpu.vector_store %arg4[%122, %c0_40, %c0_41], %125 {strides = array<i32>} : memref<8x4x16xf32, #tpu.memory_space<vmem>>, vector<1x4x16xf32>,
    %c3_i32 = arith.constant 3 : i32
    %126 = arith.index_cast %c3_i32 : i32 to index
    %c0_42 = arith.constant 0 : index
    %c0_43 = arith.constant 0 : index
    %127 = vector.load %arg1[%126, %c0_42, %c0_43] : memref<8x4x48xf32, #tpu.memory_space<vmem>>, vector<1x4x48xf32>
    %128 = vector.shape_cast %127 : vector<1x4x48xf32> to vector<4x48xf32>
    %cst_44 = arith.constant dense<0.000000e+00> : vector<4x48xf32>
    %129 = tpu.matmul %121, %3, %cst_44 {dimension_numbers = #tpu.dot_dimension_numbers<[1], [0], [0], [1], [0, 0, 1, 1], [], []>} : vector<4x16xf32>, vector<16x48xf32>, vector<4x48xf32> -> vector<4x48xf32>
    %130 = vector.broadcast %4 : vector<1x48xf32> to vector<4x48xf32>
    %131 = arith.addf %129, %130 : vector<4x48xf32>
    %132 = vector.extract_strided_slice %128 {offsets = [0, 0], sizes = [4, 16], strides = [1, 1]} : vector<4x48xf32> to vector<4x16xf32>
    %133 = vector.extract_strided_slice %131 {offsets = [0, 0], sizes = [4, 16], strides = [1, 1]} : vector<4x48xf32> to vector<4x16xf32>
    %134 = arith.addf %132, %133 : vector<4x16xf32>
    %cst_45 = arith.constant 0.000000e+00 : f32
    %135 = vector.broadcast %cst_45 : f32 to vector<4x16xf32>
    %136 = arith.subf %135, %134 : vector<4x16xf32>
    %137 = math.exp %136 : vector<4x16xf32>
    %cst_46 = arith.constant 1.000000e+00 : f32
    %138 = vector.broadcast %cst_46 : f32 to vector<4x16xf32>
    %139 = arith.addf %138, %137 : vector<4x16xf32>
    %cst_47 = arith.constant 1.000000e+00 : f32
    %140 = vector.broadcast %cst_47 : f32 to vector<4x16xf32>
    %141 = arith.divf %140, %139 : vector<4x16xf32>
    %142 = vector.extract_strided_slice %128 {offsets = [0, 16], sizes = [4, 16], strides = [1, 1]} : vector<4x48xf32> to vector<4x16xf32>
    %143 = vector.extract_strided_slice %131 {offsets = [0, 16], sizes = [4, 16], strides = [1, 1]} : vector<4x48xf32> to vector<4x16xf32>
    %144 = arith.addf %142, %143 : vector<4x16xf32>
    %cst_48 = arith.constant 0.000000e+00 : f32
    %145 = vector.broadcast %cst_48 : f32 to vector<4x16xf32>
    %146 = arith.subf %145, %144 : vector<4x16xf32>
    %147 = math.exp %146 : vector<4x16xf32>
    %cst_49 = arith.constant 1.000000e+00 : f32
    %148 = vector.broadcast %cst_49 : f32 to vector<4x16xf32>
    %149 = arith.addf %148, %147 : vector<4x16xf32>
    %cst_50 = arith.constant 1.000000e+00 : f32
    %150 = vector.broadcast %cst_50 : f32 to vector<4x16xf32>
    %151 = arith.divf %150, %149 : vector<4x16xf32>
    %152 = vector.extract_strided_slice %128 {offsets = [0, 32], sizes = [4, 16], strides = [1, 1]} : vector<4x48xf32> to vector<4x16xf32>
    %153 = vector.extract_strided_slice %131 {offsets = [0, 32], sizes = [4, 16], strides = [1, 1]} : vector<4x48xf32> to vector<4x16xf32>
    %154 = arith.mulf %141, %153 : vector<4x16xf32>
    %155 = arith.addf %152, %154 : vector<4x16xf32>
    %156 = math.tanh %155 : vector<4x16xf32>
    %cst_51 = arith.constant 1.000000e+00 : f32
    %157 = vector.broadcast %cst_51 : f32 to vector<4x16xf32>
    %158 = arith.subf %157, %151 : vector<4x16xf32>
    %159 = arith.mulf %158, %156 : vector<4x16xf32>
    %160 = arith.mulf %151, %121 : vector<4x16xf32>
    %161 = arith.addf %159, %160 : vector<4x16xf32>
    %162 = arith.index_cast %c3_i32 : i32 to index
    %c0_52 = arith.constant 0 : index
    %c0_53 = arith.constant 0 : index
    %163 = vector.load %arg4[%162, %c0_52, %c0_53] : memref<8x4x16xf32, #tpu.memory_space<vmem>>, vector<1x4x16xf32>
    %164 = vector.shape_cast %163 : vector<1x4x16xf32> to vector<4x16xf32>
    %165 = vector.shape_cast %161 : vector<4x16xf32> to vector<1x4x16xf32>
    tpu.vector_store %arg4[%162, %c0_52, %c0_53], %165 {strides = array<i32>} : memref<8x4x16xf32, #tpu.memory_space<vmem>>, vector<1x4x16xf32>,
    %c4_i32 = arith.constant 4 : i32
    %166 = arith.index_cast %c4_i32 : i32 to index
    %c0_54 = arith.constant 0 : index
    %c0_55 = arith.constant 0 : index
    %167 = vector.load %arg1[%166, %c0_54, %c0_55] : memref<8x4x48xf32, #tpu.memory_space<vmem>>, vector<1x4x48xf32>
    %168 = vector.shape_cast %167 : vector<1x4x48xf32> to vector<4x48xf32>
    %cst_56 = arith.constant dense<0.000000e+00> : vector<4x48xf32>
    %169 = tpu.matmul %161, %3, %cst_56 {dimension_numbers = #tpu.dot_dimension_numbers<[1], [0], [0], [1], [0, 0, 1, 1], [], []>} : vector<4x16xf32>, vector<16x48xf32>, vector<4x48xf32> -> vector<4x48xf32>
    %170 = vector.broadcast %4 : vector<1x48xf32> to vector<4x48xf32>
    %171 = arith.addf %169, %170 : vector<4x48xf32>
    %172 = vector.extract_strided_slice %168 {offsets = [0, 0], sizes = [4, 16], strides = [1, 1]} : vector<4x48xf32> to vector<4x16xf32>
    %173 = vector.extract_strided_slice %171 {offsets = [0, 0], sizes = [4, 16], strides = [1, 1]} : vector<4x48xf32> to vector<4x16xf32>
    %174 = arith.addf %172, %173 : vector<4x16xf32>
    %cst_57 = arith.constant 0.000000e+00 : f32
    %175 = vector.broadcast %cst_57 : f32 to vector<4x16xf32>
    %176 = arith.subf %175, %174 : vector<4x16xf32>
    %177 = math.exp %176 : vector<4x16xf32>
    %cst_58 = arith.constant 1.000000e+00 : f32
    %178 = vector.broadcast %cst_58 : f32 to vector<4x16xf32>
    %179 = arith.addf %178, %177 : vector<4x16xf32>
    %cst_59 = arith.constant 1.000000e+00 : f32
    %180 = vector.broadcast %cst_59 : f32 to vector<4x16xf32>
    %181 = arith.divf %180, %179 : vector<4x16xf32>
    %182 = vector.extract_strided_slice %168 {offsets = [0, 16], sizes = [4, 16], strides = [1, 1]} : vector<4x48xf32> to vector<4x16xf32>
    %183 = vector.extract_strided_slice %171 {offsets = [0, 16], sizes = [4, 16], strides = [1, 1]} : vector<4x48xf32> to vector<4x16xf32>
    %184 = arith.addf %182, %183 : vector<4x16xf32>
    %cst_60 = arith.constant 0.000000e+00 : f32
    %185 = vector.broadcast %cst_60 : f32 to vector<4x16xf32>
    %186 = arith.subf %185, %184 : vector<4x16xf32>
    %187 = math.exp %186 : vector<4x16xf32>
    %cst_61 = arith.constant 1.000000e+00 : f32
    %188 = vector.broadcast %cst_61 : f32 to vector<4x16xf32>
    %189 = arith.addf %188, %187 : vector<4x16xf32>
    %cst_62 = arith.constant 1.000000e+00 : f32
    %190 = vector.broadcast %cst_62 : f32 to vector<4x16xf32>
    %191 = arith.divf %190, %189 : vector<4x16xf32>
    %192 = vector.extract_strided_slice %168 {offsets = [0, 32], sizes = [4, 16], strides = [1, 1]} : vector<4x48xf32> to vector<4x16xf32>
    %193 = vector.extract_strided_slice %171 {offsets = [0, 32], sizes = [4, 16], strides = [1, 1]} : vector<4x48xf32> to vector<4x16xf32>
    %194 = arith.mulf %181, %193 : vector<4x16xf32>
    %195 = arith.addf %192, %194 : vector<4x16xf32>
    %196 = math.tanh %195 : vector<4x16xf32>
    %cst_63 = arith.constant 1.000000e+00 : f32
    %197 = vector.broadcast %cst_63 : f32 to vector<4x16xf32>
    %198 = arith.subf %197, %191 : vector<4x16xf32>
    %199 = arith.mulf %198, %196 : vector<4x16xf32>
    %200 = arith.mulf %191, %161 : vector<4x16xf32>
    %201 = arith.addf %199, %200 : vector<4x16xf32>
    %202 = arith.index_cast %c4_i32 : i32 to index
    %c0_64 = arith.constant 0 : index
    %c0_65 = arith.constant 0 : index
    %203 = vector.load %arg4[%202, %c0_64, %c0_65] : memref<8x4x16xf32, #tpu.memory_space<vmem>>, vector<1x4x16xf32>
    %204 = vector.shape_cast %203 : vector<1x4x16xf32> to vector<4x16xf32>
    %205 = vector.shape_cast %201 : vector<4x16xf32> to vector<1x4x16xf32>
    tpu.vector_store %arg4[%202, %c0_64, %c0_65], %205 {strides = array<i32>} : memref<8x4x16xf32, #tpu.memory_space<vmem>>, vector<1x4x16xf32>,
    %c5_i32 = arith.constant 5 : i32
    %206 = arith.index_cast %c5_i32 : i32 to index
    %c0_66 = arith.constant 0 : index
    %c0_67 = arith.constant 0 : index
    %207 = vector.load %arg1[%206, %c0_66, %c0_67] : memref<8x4x48xf32, #tpu.memory_space<vmem>>, vector<1x4x48xf32>
    %208 = vector.shape_cast %207 : vector<1x4x48xf32> to vector<4x48xf32>
    %cst_68 = arith.constant dense<0.000000e+00> : vector<4x48xf32>
    %209 = tpu.matmul %201, %3, %cst_68 {dimension_numbers = #tpu.dot_dimension_numbers<[1], [0], [0], [1], [0, 0, 1, 1], [], []>} : vector<4x16xf32>, vector<16x48xf32>, vector<4x48xf32> -> vector<4x48xf32>
    %210 = vector.broadcast %4 : vector<1x48xf32> to vector<4x48xf32>
    %211 = arith.addf %209, %210 : vector<4x48xf32>
    %212 = vector.extract_strided_slice %208 {offsets = [0, 0], sizes = [4, 16], strides = [1, 1]} : vector<4x48xf32> to vector<4x16xf32>
    %213 = vector.extract_strided_slice %211 {offsets = [0, 0], sizes = [4, 16], strides = [1, 1]} : vector<4x48xf32> to vector<4x16xf32>
    %214 = arith.addf %212, %213 : vector<4x16xf32>
    %cst_69 = arith.constant 0.000000e+00 : f32
    %215 = vector.broadcast %cst_69 : f32 to vector<4x16xf32>
    %216 = arith.subf %215, %214 : vector<4x16xf32>
    %217 = math.exp %216 : vector<4x16xf32>
    %cst_70 = arith.constant 1.000000e+00 : f32
    %218 = vector.broadcast %cst_70 : f32 to vector<4x16xf32>
    %219 = arith.addf %218, %217 : vector<4x16xf32>
    %cst_71 = arith.constant 1.000000e+00 : f32
    %220 = vector.broadcast %cst_71 : f32 to vector<4x16xf32>
    %221 = arith.divf %220, %219 : vector<4x16xf32>
    %222 = vector.extract_strided_slice %208 {offsets = [0, 16], sizes = [4, 16], strides = [1, 1]} : vector<4x48xf32> to vector<4x16xf32>
    %223 = vector.extract_strided_slice %211 {offsets = [0, 16], sizes = [4, 16], strides = [1, 1]} : vector<4x48xf32> to vector<4x16xf32>
    %224 = arith.addf %222, %223 : vector<4x16xf32>
    %cst_72 = arith.constant 0.000000e+00 : f32
    %225 = vector.broadcast %cst_72 : f32 to vector<4x16xf32>
    %226 = arith.subf %225, %224 : vector<4x16xf32>
    %227 = math.exp %226 : vector<4x16xf32>
    %cst_73 = arith.constant 1.000000e+00 : f32
    %228 = vector.broadcast %cst_73 : f32 to vector<4x16xf32>
    %229 = arith.addf %228, %227 : vector<4x16xf32>
    %cst_74 = arith.constant 1.000000e+00 : f32
    %230 = vector.broadcast %cst_74 : f32 to vector<4x16xf32>
    %231 = arith.divf %230, %229 : vector<4x16xf32>
    %232 = vector.extract_strided_slice %208 {offsets = [0, 32], sizes = [4, 16], strides = [1, 1]} : vector<4x48xf32> to vector<4x16xf32>
    %233 = vector.extract_strided_slice %211 {offsets = [0, 32], sizes = [4, 16], strides = [1, 1]} : vector<4x48xf32> to vector<4x16xf32>
    %234 = arith.mulf %221, %233 : vector<4x16xf32>
    %235 = arith.addf %232, %234 : vector<4x16xf32>
    %236 = math.tanh %235 : vector<4x16xf32>
    %cst_75 = arith.constant 1.000000e+00 : f32
    %237 = vector.broadcast %cst_75 : f32 to vector<4x16xf32>
    %238 = arith.subf %237, %231 : vector<4x16xf32>
    %239 = arith.mulf %238, %236 : vector<4x16xf32>
    %240 = arith.mulf %231, %201 : vector<4x16xf32>
    %241 = arith.addf %239, %240 : vector<4x16xf32>
    %242 = arith.index_cast %c5_i32 : i32 to index
    %c0_76 = arith.constant 0 : index
    %c0_77 = arith.constant 0 : index
    %243 = vector.load %arg4[%242, %c0_76, %c0_77] : memref<8x4x16xf32, #tpu.memory_space<vmem>>, vector<1x4x16xf32>
    %244 = vector.shape_cast %243 : vector<1x4x16xf32> to vector<4x16xf32>
    %245 = vector.shape_cast %241 : vector<4x16xf32> to vector<1x4x16xf32>
    tpu.vector_store %arg4[%242, %c0_76, %c0_77], %245 {strides = array<i32>} : memref<8x4x16xf32, #tpu.memory_space<vmem>>, vector<1x4x16xf32>,
    %c6_i32 = arith.constant 6 : i32
    %246 = arith.index_cast %c6_i32 : i32 to index
    %c0_78 = arith.constant 0 : index
    %c0_79 = arith.constant 0 : index
    %247 = vector.load %arg1[%246, %c0_78, %c0_79] : memref<8x4x48xf32, #tpu.memory_space<vmem>>, vector<1x4x48xf32>
    %248 = vector.shape_cast %247 : vector<1x4x48xf32> to vector<4x48xf32>
    %cst_80 = arith.constant dense<0.000000e+00> : vector<4x48xf32>
    %249 = tpu.matmul %241, %3, %cst_80 {dimension_numbers = #tpu.dot_dimension_numbers<[1], [0], [0], [1], [0, 0, 1, 1], [], []>} : vector<4x16xf32>, vector<16x48xf32>, vector<4x48xf32> -> vector<4x48xf32>
    %250 = vector.broadcast %4 : vector<1x48xf32> to vector<4x48xf32>
    %251 = arith.addf %249, %250 : vector<4x48xf32>
    %252 = vector.extract_strided_slice %248 {offsets = [0, 0], sizes = [4, 16], strides = [1, 1]} : vector<4x48xf32> to vector<4x16xf32>
    %253 = vector.extract_strided_slice %251 {offsets = [0, 0], sizes = [4, 16], strides = [1, 1]} : vector<4x48xf32> to vector<4x16xf32>
    %254 = arith.addf %252, %253 : vector<4x16xf32>
    %cst_81 = arith.constant 0.000000e+00 : f32
    %255 = vector.broadcast %cst_81 : f32 to vector<4x16xf32>
    %256 = arith.subf %255, %254 : vector<4x16xf32>
    %257 = math.exp %256 : vector<4x16xf32>
    %cst_82 = arith.constant 1.000000e+00 : f32
    %258 = vector.broadcast %cst_82 : f32 to vector<4x16xf32>
    %259 = arith.addf %258, %257 : vector<4x16xf32>
    %cst_83 = arith.constant 1.000000e+00 : f32
    %260 = vector.broadcast %cst_83 : f32 to vector<4x16xf32>
    %261 = arith.divf %260, %259 : vector<4x16xf32>
    %262 = vector.extract_strided_slice %248 {offsets = [0, 16], sizes = [4, 16], strides = [1, 1]} : vector<4x48xf32> to vector<4x16xf32>
    %263 = vector.extract_strided_slice %251 {offsets = [0, 16], sizes = [4, 16], strides = [1, 1]} : vector<4x48xf32> to vector<4x16xf32>
    %264 = arith.addf %262, %263 : vector<4x16xf32>
    %cst_84 = arith.constant 0.000000e+00 : f32
    %265 = vector.broadcast %cst_84 : f32 to vector<4x16xf32>
    %266 = arith.subf %265, %264 : vector<4x16xf32>
    %267 = math.exp %266 : vector<4x16xf32>
    %cst_85 = arith.constant 1.000000e+00 : f32
    %268 = vector.broadcast %cst_85 : f32 to vector<4x16xf32>
    %269 = arith.addf %268, %267 : vector<4x16xf32>
    %cst_86 = arith.constant 1.000000e+00 : f32
    %270 = vector.broadcast %cst_86 : f32 to vector<4x16xf32>
    %271 = arith.divf %270, %269 : vector<4x16xf32>
    %272 = vector.extract_strided_slice %248 {offsets = [0, 32], sizes = [4, 16], strides = [1, 1]} : vector<4x48xf32> to vector<4x16xf32>
    %273 = vector.extract_strided_slice %251 {offsets = [0, 32], sizes = [4, 16], strides = [1, 1]} : vector<4x48xf32> to vector<4x16xf32>
    %274 = arith.mulf %261, %273 : vector<4x16xf32>
    %275 = arith.addf %272, %274 : vector<4x16xf32>
    %276 = math.tanh %275 : vector<4x16xf32>
    %cst_87 = arith.constant 1.000000e+00 : f32
    %277 = vector.broadcast %cst_87 : f32 to vector<4x16xf32>
    %278 = arith.subf %277, %271 : vector<4x16xf32>
    %279 = arith.mulf %278, %276 : vector<4x16xf32>
    %280 = arith.mulf %271, %241 : vector<4x16xf32>
    %281 = arith.addf %279, %280 : vector<4x16xf32>
    %282 = arith.index_cast %c6_i32 : i32 to index
    %c0_88 = arith.constant 0 : index
    %c0_89 = arith.constant 0 : index
    %283 = vector.load %arg4[%282, %c0_88, %c0_89] : memref<8x4x16xf32, #tpu.memory_space<vmem>>, vector<1x4x16xf32>
    %284 = vector.shape_cast %283 : vector<1x4x16xf32> to vector<4x16xf32>
    %285 = vector.shape_cast %281 : vector<4x16xf32> to vector<1x4x16xf32>
    tpu.vector_store %arg4[%282, %c0_88, %c0_89], %285 {strides = array<i32>} : memref<8x4x16xf32, #tpu.memory_space<vmem>>, vector<1x4x16xf32>,
    %c7_i32 = arith.constant 7 : i32
    %286 = arith.index_cast %c7_i32 : i32 to index
    %c0_90 = arith.constant 0 : index
    %c0_91 = arith.constant 0 : index
    %287 = vector.load %arg1[%286, %c0_90, %c0_91] : memref<8x4x48xf32, #tpu.memory_space<vmem>>, vector<1x4x48xf32>
    %288 = vector.shape_cast %287 : vector<1x4x48xf32> to vector<4x48xf32>
    %cst_92 = arith.constant dense<0.000000e+00> : vector<4x48xf32>
    %289 = tpu.matmul %281, %3, %cst_92 {dimension_numbers = #tpu.dot_dimension_numbers<[1], [0], [0], [1], [0, 0, 1, 1], [], []>} : vector<4x16xf32>, vector<16x48xf32>, vector<4x48xf32> -> vector<4x48xf32>
    %290 = vector.broadcast %4 : vector<1x48xf32> to vector<4x48xf32>
    %291 = arith.addf %289, %290 : vector<4x48xf32>
    %292 = vector.extract_strided_slice %288 {offsets = [0, 0], sizes = [4, 16], strides = [1, 1]} : vector<4x48xf32> to vector<4x16xf32>
    %293 = vector.extract_strided_slice %291 {offsets = [0, 0], sizes = [4, 16], strides = [1, 1]} : vector<4x48xf32> to vector<4x16xf32>
    %294 = arith.addf %292, %293 : vector<4x16xf32>
    %cst_93 = arith.constant 0.000000e+00 : f32
    %295 = vector.broadcast %cst_93 : f32 to vector<4x16xf32>
    %296 = arith.subf %295, %294 : vector<4x16xf32>
    %297 = math.exp %296 : vector<4x16xf32>
    %cst_94 = arith.constant 1.000000e+00 : f32
    %298 = vector.broadcast %cst_94 : f32 to vector<4x16xf32>
    %299 = arith.addf %298, %297 : vector<4x16xf32>
    %cst_95 = arith.constant 1.000000e+00 : f32
    %300 = vector.broadcast %cst_95 : f32 to vector<4x16xf32>
    %301 = arith.divf %300, %299 : vector<4x16xf32>
    %302 = vector.extract_strided_slice %288 {offsets = [0, 16], sizes = [4, 16], strides = [1, 1]} : vector<4x48xf32> to vector<4x16xf32>
    %303 = vector.extract_strided_slice %291 {offsets = [0, 16], sizes = [4, 16], strides = [1, 1]} : vector<4x48xf32> to vector<4x16xf32>
    %304 = arith.addf %302, %303 : vector<4x16xf32>
    %cst_96 = arith.constant 0.000000e+00 : f32
    %305 = vector.broadcast %cst_96 : f32 to vector<4x16xf32>
    %306 = arith.subf %305, %304 : vector<4x16xf32>
    %307 = math.exp %306 : vector<4x16xf32>
    %cst_97 = arith.constant 1.000000e+00 : f32
    %308 = vector.broadcast %cst_97 : f32 to vector<4x16xf32>
    %309 = arith.addf %308, %307 : vector<4x16xf32>
    %cst_98 = arith.constant 1.000000e+00 : f32
    %310 = vector.broadcast %cst_98 : f32 to vector<4x16xf32>
    %311 = arith.divf %310, %309 : vector<4x16xf32>
    %312 = vector.extract_strided_slice %288 {offsets = [0, 32], sizes = [4, 16], strides = [1, 1]} : vector<4x48xf32> to vector<4x16xf32>
    %313 = vector.extract_strided_slice %291 {offsets = [0, 32], sizes = [4, 16], strides = [1, 1]} : vector<4x48xf32> to vector<4x16xf32>
    %314 = arith.mulf %301, %313 : vector<4x16xf32>
    %315 = arith.addf %312, %314 : vector<4x16xf32>
    %316 = math.tanh %315 : vector<4x16xf32>
    %cst_99 = arith.constant 1.000000e+00 : f32
    %317 = vector.broadcast %cst_99 : f32 to vector<4x16xf32>
    %318 = arith.subf %317, %311 : vector<4x16xf32>
    %319 = arith.mulf %318, %316 : vector<4x16xf32>
    %320 = arith.mulf %311, %281 : vector<4x16xf32>
    %321 = arith.addf %319, %320 : vector<4x16xf32>
    %322 = arith.index_cast %c7_i32 : i32 to index
    %c0_100 = arith.constant 0 : index
    %c0_101 = arith.constant 0 : index
    %323 = vector.load %arg4[%322, %c0_100, %c0_101] : memref<8x4x16xf32, #tpu.memory_space<vmem>>, vector<1x4x16xf32>
    %324 = vector.shape_cast %323 : vector<1x4x16xf32> to vector<4x16xf32>
    %325 = vector.shape_cast %321 : vector<4x16xf32> to vector<1x4x16xf32>
    tpu.vector_store %arg4[%322, %c0_100, %c0_101], %325 {strides = array<i32>} : memref<8x4x16xf32, #tpu.memory_space<vmem>>, vector<1x4x16xf32>,
    %c8_i32 = arith.constant 8 : i32
    %c0_102 = arith.constant 0 : index
    %c0_103 = arith.constant 0 : index
    %326 = vector.load %arg5[%c0_102, %c0_103] : memref<4x16xf32, #tpu.memory_space<vmem>>, vector<4x16xf32>
    tpu.vector_store %arg5[%c0_102, %c0_103], %321 {strides = array<i32>} : memref<4x16xf32, #tpu.memory_space<vmem>>, vector<4x16xf32>,
    return
  }
  func.func @transform_0(%arg0: i32) -> (i32, i32, i32) {
    %c0_i32 = arith.constant 0 : i32
    %c0_i32_0 = arith.constant 0 : i32
    %c0_i32_1 = arith.constant 0 : i32
    return %arg0, %c0_i32, %c0_i32_0 : i32, i32, i32
  }
  func.func @transform_1(%arg0: i32) -> (i32, i32) {
    %c0_i32 = arith.constant 0 : i32
    %c0_i32_0 = arith.constant 0 : i32
    %c0_i32_1 = arith.constant 0 : i32
    return %c0_i32, %c0_i32_0 : i32, i32
  }
  func.func @transform_2(%arg0: i32) -> (i32, i32) {
    %c0_i32 = arith.constant 0 : i32
    %c0_i32_0 = arith.constant 0 : i32
    %c0_i32_1 = arith.constant 0 : i32
    return %c0_i32, %c0_i32_0 : i32, i32
  }
  func.func @transform_3(%arg0: i32) -> (i32, i32, i32) {
    %c0_i32 = arith.constant 0 : i32
    %c0_i32_0 = arith.constant 0 : i32
    %c0_i32_1 = arith.constant 0 : i32
    return %arg0, %c0_i32, %c0_i32_0 : i32, i32, i32
  }
}

</mosaic_0001>

<llo_original>
// kernel: tpu_custom_call.1
$region0: #{tpu_custom_call.1}
  #allocation0 [shape = 'u32[]', space=smem, size = 0x4, offset = 0x4, fixed_abs, tag = 'smem constant byte address 0x4 - core index']
  #allocation1 [shape = 'u32[144,128]{1,0:T(1,128)}', space=vmem, size = 0x12000, scoped, tag = 'internal scratch']
  #allocation2 [shape = 'f32[4,16]{1,0:T(4,128)}', space=vmem, size = 0x800, scoped, tag = 'scratch operand']
  %s0 = inlined_call_operand.hbm [shape: f32[8,4,48], index: 0, kind: input, shape index: {}]
  %s1 = inlined_call_operand.hbm [shape: f32[16,48], index: 1, kind: input, shape index: {}]
  %s2 = inlined_call_operand.vmem [shape: f32[1,48], index: 2, kind: input, shape index: {}]
  %s3 = inlined_call_operand.hbm [shape: f32[8,4,16], index: 3, kind: output, shape index: {}]
  %s4 = sld [smem:[#allocation0]]
  $region34: #{tpu_custom_call.1} parent=0
    _
  %s6 = ssub.s32 1, %s4
  %s7 = scalar_select 0, %s6, %s4
  $region1: #{tpu_custom_call.1} parent=0
    #allocation3 [shape = 'u8[16384]{0}', space=vmem, size = 0x4000, scoped, tag = 'input window, operand 0, single buffered']
    #allocation4 [shape = 's32[1]{0}', space=sflag, size = 0x4, scoped, tag = 'scoped memory for tpu_custom_call.1']
    #allocation5 [shape = 's32[1]{0}', space=sflag, size = 0x4, scoped, tag = 'scoped memory for tpu_custom_call.1']
    #allocation6 [shape = 'u8[8192]{0}', space=vmem, size = 0x2000, scoped, tag = 'input window, operand 1, single buffered']
    #allocation7 [shape = 's32[1]{0}', space=sflag, size = 0x4, scoped, tag = 'scoped memory for tpu_custom_call.1']
    #allocation8 [shape = 'u8[16384]{0}', space=vmem, size = 0x4000, scoped, tag = 'output window, operand 0, single buffered']
    %8 = vsyncpa [#allocation4], 0
    %9 = vsyncpa [#allocation7], 0
    %10 = vsyncpa [#allocation5], 0
    // Predicated region
    $region2: #{tpu_custom_call.1} parent=1 // pred_check
      _
    $region3: #{tpu_custom_call.1} parent=1 // pred_check_branch
      %12 = sbr.rel (0) target = $region5
    $region4: #{tpu_custom_call.1} parent=1 // pred_region
      %s14 = ssub.s32 512, 512
      %15 = vsyncadd [#allocation4], %s14
      %s16 = sshll.u32 [#allocation3], 4
      %s17 = int_to_ptr.vmem [resolvable:$true] %s16
      %22 = dma.hbm_to_vmem [thread:$0]  %s0, 512, %s17, [#allocation4], 64, 64, 4
    $region5: #{tpu_custom_call.1} parent=1 // pred_fallthru
      _
    // Predicated region
    $region6: #{tpu_custom_call.1} parent=1 // pred_check
      _
    $region7: #{tpu_custom_call.1} parent=1 // pred_check_branch
      %24 = sbr.rel (0) target = $region9
    $region8: #{tpu_custom_call.1} parent=1 // pred_region
      %s26 = ssub.s32 256, 256
      %27 = vsyncadd [#allocation7], %s26
      %s28 = sshll.u32 [#allocation6], 4
      %s29 = int_to_ptr.vmem [resolvable:$true] %s28
      %34 = dma.hbm_to_vmem [thread:$0]  %s1, 256, %s29, [#allocation7], 128, 128, 8
    $region9: #{tpu_custom_call.1} parent=1 // pred_fallthru
      _
    // Predicated region
    $region10: #{tpu_custom_call.1} parent=1 // pred_check
      _
    $region11: #{tpu_custom_call.1} parent=1 // pred_check_branch
      %36 = sbr.rel (0) target = $region13
    $region12: #{tpu_custom_call.1} parent=1 // pred_region
      _
    $region13: #{tpu_custom_call.1} parent=1 // pred_fallthru
      _
    // Predicated region
    $region14: #{tpu_custom_call.1} parent=1 // pred_check
      _
    $region15: #{tpu_custom_call.1} parent=1 // pred_check_branch
      %38 = sbr.rel (0) target = $region17
    $region16: #{tpu_custom_call.1} parent=1 // pred_region
      %39 = dma.done [#allocation4], 512
    $region17: #{tpu_custom_call.1} parent=1 // pred_fallthru
      _
    // Predicated region
    $region18: #{tpu_custom_call.1} parent=1 // pred_check
      _
    $region19: #{tpu_custom_call.1} parent=1 // pred_check_branch
      %41 = sbr.rel (0) target = $region21
    $region20: #{tpu_custom_call.1} parent=1 // pred_region
      %42 = dma.done [#allocation7], 256
    $region21: #{tpu_custom_call.1} parent=1 // pred_fallthru
      _
    %p43 = scmp.eq.s32.totalorder 0, 0
    // Predicated region
    $region22: #{tpu_custom_call.1} parent=1 // pred_check
      %p44 = pneg %p43
    $region23: #{tpu_custom_call.1} parent=1 // pred_check_branch
      %46 = sbr.rel (%p44) target = $region25
    $region24: #{tpu_custom_call.1} parent=1 // pred_region
      %vm47 = vcmask 125952
      %48 = vst.msk [vmem:[#allocation2] sm:$0xf] %vm47, 0.0
    $region25: #{tpu_custom_call.1} parent=1 // pred_fallthru
      _
    %v49 = vld [vmem:[#allocation6] sm:$0xff]
    %v50 = vld [vmem:[#allocation6 + $0x8] sm:$0xff]
    %v51 = vld [vmem:[%s2] sm:$0x1]
    %v52 = vld [vmem:[#allocation2] sm:$0xf]
    %v53 = vld [vmem:[#allocation3] sm:$0xf]
    %v55 = vlaneseq
    %v56 = vshrl.u32 %v55, 7
    %v57 = vsub.s32 0, %v56
    %v58 = vrot.slane %v51, %v57
    %vm60 = vcmask 130048
    %v62 = vsel %vm60, %v52, 0
    %64 = vmatprep.subr.mxu0 0.0
    %65 = vmatpush1.msra.mxu0 %v49
    %66 = vmatprep.subr.mxu0 0.0
    %67 = vmatpush1.msra.mxu0 %v50
    %68 = vmatprep.subr.mxu0 0.0
    %69 = vmatpush1.msra.mxu0 0.0
    %70 = vmatprep.subr.mxu0 0.0
    %71 = vmatpush1.msra.mxu0 0.0
    %72 = vmatprep.subr.mxu0 0.0
    %73 = vmatpush1.msra.mxu0 0.0
    %74 = vmatprep.subr.mxu0 0.0
    %75 = vmatpush1.msra.mxu0 0.0
    %76 = vmatprep.subr.mxu0 0.0
    %77 = vmatpush1.msra.mxu0 0.0
    %78 = vmatprep.subr.mxu0 0.0
    %79 = vmatpush1.msra.mxu0 0.0
    %80 = vmatprep.subr.mxu0 0.0
    %81 = vmatpush1.msra.mxu0 0.0
    %82 = vmatprep.subr.mxu0 0.0
    %83 = vmatpush1.msra.mxu0 0.0
    %84 = vmatprep.subr.mxu0 0.0
    %85 = vmatpush1.msra.mxu0 0.0
    %86 = vmatprep.subr.mxu0 0.0
    %87 = vmatpush1.msra.mxu0 0.0
    %88 = vmatprep.subr.mxu0 0.0
    %89 = vmatpush1.msra.mxu0 0.0
    %90 = vmatprep.subr.mxu0 0.0
    %91 = vmatpush1.msra.mxu0 0.0
    %92 = vmatprep.subr.mxu0 0.0
    %93 = vmatpush1.msra.mxu0 0.0
    %94 = vmatprep.subr.mxu0 0.0
    %95 = vmatpush1.msra.mxu0 0.0
    %96 = vmatprep.subr.mxu0 0.0
    %97 = vmatpush1.msra.mxu0 0.0
    %98 = vmatprep.subr.mxu0 0.0
    %99 = vmatpush1.msra.mxu0 0.0
    %100 = vmatprep.subr.mxu0 0.0
    %101 = vmatpush1.msra.mxu0 0.0
    %102 = vmatprep.subr.mxu0 0.0
    %103 = vmatpush1.msra.mxu0 0.0
    %104 = vmatprep.subr.mxu0 0.0
    %105 = vmatpush1.msra.mxu0 0.0
    %106 = vmatprep.subr.mxu0 0.0
    %107 = vmatpush1.msra.mxu0 0.0
    %108 = vmatprep.subr.mxu0 0.0
    %109 = vmatpush1.msra.mxu0 0.0
    %110 = vmatprep.subr.mxu0 0.0
    %111 = vmatpush1.msra.mxu0 0.0
    %112 = vmatprep.subr.mxu0 0.0
    %113 = vmatpush1.msra.mxu0 0.0
    %114 = vmatprep.subr.mxu0 0.0
    %115 = vmatpush1.msra.mxu0 0.0
    %116 = vmatprep.subr.mxu0 0.0
    %117 = vmatpush1.msra.mxu0 0.0
    %118 = vmatprep.subr.mxu0 0.0
    %119 = vmatpush1.msra.mxu0 0.0
    %120 = vmatprep.subr.mxu0 0.0
    %121 = vmatpush1.msra.mxu0 0.0
    %122 = vmatprep.subr.mxu0 0.0
    %123 = vmatpush1.msra.mxu0 0.0
    %124 = vmatprep.subr.mxu0 0.0
    %125 = vmatpush1.msra.mxu0 0.0
    %126 = vmatprep.subr.mxu0 0.0
    %127 = vmatpush1.msra.mxu0 0.0
    %128 = vmatprep.mubr.f32.mxu0 0.0
    %129 = vmatmul.mubr.f32.gmra.mrb[0].mxu0 %v62
    %v130 = vpop.f32.mrb[0].mxu0
    %v131 = vadd.f32 %v58, %v130
    %v132 = vpop.f32.mrb[0].mxu0
    %133 = vdwg.mxu0
    %v134 = vadd.f32 %v53, %v131
    %v135 = vsub.f32 0.0, %v134
    %v136 = vmul.f32 %v135, 1.442695
    %v137 = vpow.pop %v136
    %v138 = vadd.f32 %v137, 1.0
    %v139 = vrcp.pop %v138
    %v140 = vmul.f32 1.0, %v139
    %142 = vrot.lane.b32.xlu0 %v131, 96
    %v143 = vpop.permute.xlu0 %142
    %v145 = vmul.f32 %v140, %v143
    %147 = vrot.lane.b32.xlu0 %v145, 32
    %v148 = vpop.permute.xlu0 %147
    %v150 = vadd.f32 %v53, %v148
    %v151 = vtanh.pop %v150
    %v152 = vsub.f32 1.0, %v140
    %154 = vrot.lane.b32.xlu0 %v151, 112
    %v155 = vpop.permute.xlu0 %154
    %v157 = vmul.f32 %v152, %v155
    %158 = vrot.lane.b32.xlu0 %v52, 16
    %v159 = vpop.permute.xlu0 %158
    %v161 = vmul.f32 %v140, %v159
    %v162 = vadd.f32 %v157, %v161
    %164 = vrot.lane.b32.xlu0 %v162, 112
    %v165 = vpop.permute.xlu0 %164
    %vm167 = vcmask 125952
    %168 = vst.msk [vmem:[#allocation8] sm:$0xf] %vm167, %v165
    %s169 = scalar_lea.vmem [#allocation3], 4
    %v170 = vld [vmem:[%s169] sm:$0xf]
    %v171 = vsel %vm60, %v165, 0
    %173 = vmatprep.subr.mxu0 0.0
    %174 = vmatpush1.msra.mxu0 %v49
    %175 = vmatprep.subr.mxu0 0.0
    %176 = vmatpush1.msra.mxu0 %v50
    %177 = vmatprep.subr.mxu0 0.0
    %178 = vmatpush1.msra.mxu0 0.0
    %179 = vmatprep.subr.mxu0 0.0
    %180 = vmatpush1.msra.mxu0 0.0
    %181 = vmatprep.subr.mxu0 0.0
    %182 = vmatpush1.msra.mxu0 0.0
    %183 = vmatprep.subr.mxu0 0.0
    %184 = vmatpush1.msra.mxu0 0.0
    %185 = vmatprep.subr.mxu0 0.0
    %186 = vmatpush1.msra.mxu0 0.0
    %187 = vmatprep.subr.mxu0 0.0
    %188 = vmatpush1.msra.mxu0 0.0
    %189 = vmatprep.subr.mxu0 0.0
    %190 = vmatpush1.msra.mxu0 0.0
    %191 = vmatprep.subr.mxu0 0.0
    %192 = vmatpush1.msra.mxu0 0.0
    %193 = vmatprep.subr.mxu0 0.0
    %194 = vmatpush1.msra.mxu0 0.0
    %195 = vmatprep.subr.mxu0 0.0
    %196 = vmatpush1.msra.mxu0 0.0
    %197 = vmatprep.subr.mxu0 0.0
    %198 = vmatpush1.msra.mxu0 0.0
    %199 = vmatprep.subr.mxu0 0.0
    %200 = vmatpush1.msra.mxu0 0.0
    %201 = vmatprep.subr.mxu0 0.0
    %202 = vmatpush1.msra.mxu0 0.0
    %203 = vmatprep.subr.mxu0 0.0
    %204 = vmatpush1.msra.mxu0 0.0
    %205 = vmatprep.subr.mxu0 0.0
    %206 = vmatpush1.msra.mxu0 0.0
    %207 = vmatprep.subr.mxu0 0.0
    %208 = vmatpush1.msra.mxu0 0.0
    %209 = vmatprep.subr.mxu0 0.0
    %210 = vmatpush1.msra.mxu0 0.0
    %211 = vmatprep.subr.mxu0 0.0
    %212 = vmatpush1.msra.mxu0 0.0
    %213 = vmatprep.subr.mxu0 0.0
    %214 = vmatpush1.msra.mxu0 0.0
    %215 = vmatprep.subr.mxu0 0.0
    %216 = vmatpush1.msra.mxu0 0.0
    %217 = vmatprep.subr.mxu0 0.0
    %218 = vmatpush1.msra.mxu0 0.0
    %219 = vmatprep.subr.mxu0 0.0
    %220 = vmatpush1.msra.mxu0 0.0
    %221 = vmatprep.subr.mxu0 0.0
    %222 = vmatpush1.msra.mxu0 0.0
    %223 = vmatprep.subr.mxu0 0.0
    %224 = vmatpush1.msra.mxu0 0.0
    %225 = vmatprep.subr.mxu0 0.0
    %226 = vmatpush1.msra.mxu0 0.0
    %227 = vmatprep.subr.mxu0 0.0
    %228 = vmatpush1.msra.mxu0 0.0
    %229 = vmatprep.subr.mxu0 0.0
    %230 = vmatpush1.msra.mxu0 0.0
    %231 = vmatprep.subr.mxu0 0.0
    %232 = vmatpush1.msra.mxu0 0.0
    %233 = vmatprep.subr.mxu0 0.0
    %234 = vmatpush1.msra.mxu0 0.0
    %235 = vmatprep.subr.mxu0 0.0
    %236 = vmatpush1.msra.mxu0 0.0
    %237 = vmatprep.mubr.f32.mxu0 0.0
    %238 = vmatmul.mubr.f32.gmra.mrb[0].mxu0 %v171
    %v239 = vpop.f32.mrb[0].mxu0
    %v240 = vadd.f32 %v58, %v239
    %v241 = vpop.f32.mrb[0].mxu0
    %242 = vdwg.mxu0
    %v243 = vadd.f32 %v170, %v240
    %v244 = vsub.f32 0.0, %v243
    %v245 = vmul.f32 %v244, 1.442695
    %v246 = vpow.pop %v245
    %v247 = vadd.f32 %v246, 1.0
    %v248 = vrcp.pop %v247
    %v249 = vmul.f32 1.0, %v248
    %251 = vrot.lane.b32.xlu0 %v240, 96
    %v252 = vpop.permute.xlu0 %251
    %v254 = vmul.f32 %v249, %v252
    %256 = vrot.lane.b32.xlu0 %v254, 32
    %v257 = vpop.permute.xlu0 %256
    %v259 = vadd.f32 %v170, %v257
    %v260 = vtanh.pop %v259
    %v261 = vsub.f32 1.0, %v249
    %263 = vrot.lane.b32.xlu0 %v260, 112
    %v264 = vpop.permute.xlu0 %263
    %v266 = vmul.f32 %v261, %v264
    %v267 = vmul.f32 %v249, %v162
    %v268 = vadd.f32 %v266, %v267
    %270 = vrot.lane.b32.xlu0 %v268, 112
    %v271 = vpop.permute.xlu0 %270
    %s273 = scalar_lea.vmem [#allocation8], 4
    %274 = vst.msk [vmem:[%s273] sm:$0xf] %vm167, %v271
    %s275 = scalar_lea.vmem [#allocation3], 8
    %v276 = vld [vmem:[%s275] sm:$0xf]
    %v277 = vsel %vm60, %v271, 0
    %279 = vmatprep.subr.mxu0 0.0
    %280 = vmatpush1.msra.mxu0 %v49
    %281 = vmatprep.subr.mxu0 0.0
    %282 = vmatpush1.msra.mxu0 %v50
    %283 = vmatprep.subr.mxu0 0.0
    %284 = vmatpush1.msra.mxu0 0.0
    %285 = vmatprep.subr.mxu0 0.0
    %286 = vmatpush1.msra.mxu0 0.0
    %287 = vmatprep.subr.mxu0 0.0
    %288 = vmatpush1.msra.mxu0 0.0
    %289 = vmatprep.subr.mxu0 0.0
    %290 = vmatpush1.msra.mxu0 0.0
    %291 = vmatprep.subr.mxu0 0.0
    %292 = vmatpush1.msra.mxu0 0.0
    %293 = vmatprep.subr.mxu0 0.0
    %294 = vmatpush1.msra.mxu0 0.0
    %295 = vmatprep.subr.mxu0 0.0
    %296 = vmatpush1.msra.mxu0 0.0
    %297 = vmatprep.subr.mxu0 0.0
    %298 = vmatpush1.msra.mxu0 0.0
    %299 = vmatprep.subr.mxu0 0.0
    %300 = vmatpush1.msra.mxu0 0.0
    %301 = vmatprep.subr.mxu0 0.0
    %302 = vmatpush1.msra.mxu0 0.0
    %303 = vmatprep.subr.mxu0 0.0
    %304 = vmatpush1.msra.mxu0 0.0
    %305 = vmatprep.subr.mxu0 0.0
    %306 = vmatpush1.msra.mxu0 0.0
    %307 = vmatprep.subr.mxu0 0.0
    %308 = vmatpush1.msra.mxu0 0.0
    %309 = vmatprep.subr.mxu0 0.0
    %310 = vmatpush1.msra.mxu0 0.0
    %311 = vmatprep.subr.mxu0 0.0
    %312 = vmatpush1.msra.mxu0 0.0
    %313 = vmatprep.subr.mxu0 0.0
    %314 = vmatpush1.msra.mxu0 0.0
    %315 = vmatprep.subr.mxu0 0.0
    %316 = vmatpush1.msra.mxu0 0.0
    %317 = vmatprep.subr.mxu0 0.0
    %318 = vmatpush1.msra.mxu0 0.0
    %319 = vmatprep.subr.mxu0 0.0
    %320 = vmatpush1.msra.mxu0 0.0
    %321 = vmatprep.subr.mxu0 0.0
    %322 = vmatpush1.msra.mxu0 0.0
    %323 = vmatprep.subr.mxu0 0.0
    %324 = vmatpush1.msra.mxu0 0.0
    %325 = vmatprep.subr.mxu0 0.0
    %326 = vmatpush1.msra.mxu0 0.0
    %327 = vmatprep.subr.mxu0 0.0
    %328 = vmatpush1.msra.mxu0 0.0
    %329 = vmatprep.subr.mxu0 0.0
    %330 = vmatpush1.msra.mxu0 0.0
    %331 = vmatprep.subr.mxu0 0.0
    %332 = vmatpush1.msra.mxu0 0.0
    %333 = vmatprep.subr.mxu0 0.0
    %334 = vmatpush1.msra.mxu0 0.0
    %335 = vmatprep.subr.mxu0 0.0
    %336 = vmatpush1.msra.mxu0 0.0
    %337 = vmatprep.subr.mxu0 0.0
    %338 = vmatpush1.msra.mxu0 0.0
    %339 = vmatprep.subr.mxu0 0.0
    %340 = vmatpush1.msra.mxu0 0.0
    %341 = vmatprep.subr.mxu0 0.0
    %342 = vmatpush1.msra.mxu0 0.0
    %343 = vmatprep.mubr.f32.mxu0 0.0
    %344 = vmatmul.mubr.f32.gmra.mrb[0].mxu0 %v277
    %v345 = vpop.f32.mrb[0].mxu0
    %v346 = vadd.f32 %v58, %v345
    %v347 = vpop.f32.mrb[0].mxu0
    %348 = vdwg.mxu0
    %v349 = vadd.f32 %v276, %v346
    %v350 = vsub.f32 0.0, %v349
    %v351 = vmul.f32 %v350, 1.442695
    %v352 = vpow.pop %v351
    %v353 = vadd.f32 %v352, 1.0
    %v354 = vrcp.pop %v353
    %v355 = vmul.f32 1.0, %v354
    %357 = vrot.lane.b32.xlu0 %v346, 96
    %v358 = vpop.permute.xlu0 %357
    %v360 = vmul.f32 %v355, %v358
    %362 = vrot.lane.b32.xlu0 %v360, 32
    %v363 = vpop.permute.xlu0 %362
    %v365 = vadd.f32 %v276, %v363
    %v366 = vtanh.pop %v365
    %v367 = vsub.f32 1.0, %v355
    %369 = vrot.lane.b32.xlu0 %v366, 112
    %v370 = vpop.permute.xlu0 %369
    %v372 = vmul.f32 %v367, %v370
    %v373 = vmul.f32 %v355, %v268
    %v374 = vadd.f32 %v372, %v373
    %376 = vrot.lane.b32.xlu0 %v374, 112
    %v377 = vpop.permute.xlu0 %376
    %s379 = scalar_lea.vmem [#allocation8], 8
    %380 = vst.msk [vmem:[%s379] sm:$0xf] %vm167, %v377
    %s381 = scalar_lea.vmem [#allocation3], 12
    %v382 = vld [vmem:[%s381] sm:$0xf]
    %v383 = vsel %vm60, %v377, 0
    %385 = vmatprep.subr.mxu0 0.0
    %386 = vmatpush1.msra.mxu0 %v49
    %387 = vmatprep.subr.mxu0 0.0
    %388 = vmatpush1.msra.mxu0 %v50
    %389 = vmatprep.subr.mxu0 0.0
    %390 = vmatpush1.msra.mxu0 0.0
    %391 = vmatprep.subr.mxu0 0.0
    %392 = vmatpush1.msra.mxu0 0.0
    %393 = vmatprep.subr.mxu0 0.0
    %394 = vmatpush1.msra.mxu0 0.0
    %395 = vmatprep.subr.mxu0 0.0
    %396 = vmatpush1.msra.mxu0 0.0
    %397 = vmatprep.subr.mxu0 0.0
    %398 = vmatpush1.msra.mxu0 0.0
    %399 = vmatprep.subr.mxu0 0.0
    %400 = vmatpush1.msra.mxu0 0.0
    %401 = vmatprep.subr.mxu0 0.0
    %402 = vmatpush1.msra.mxu0 0.0
    %403 = vmatprep.subr.mxu0 0.0
    %404 = vmatpush1.msra.mxu0 0.0
    %405 = vmatprep.subr.mxu0 0.0
    %406 = vmatpush1.msra.mxu0 0.0
    %407 = vmatprep.subr.mxu0 0.0
    %408 = vmatpush1.msra.mxu0 0.0
    %409 = vmatprep.subr.mxu0 0.0
    %410 = vmatpush1.msra.mxu0 0.0
    %411 = vmatprep.subr.mxu0 0.0
    %412 = vmatpush1.msra.mxu0 0.0
    %413 = vmatprep.subr.mxu0 0.0
    %414 = vmatpush1.msra.mxu0 0.0
    %415 = vmatprep.subr.mxu0 0.0
    %416 = vmatpush1.msra.mxu0 0.0
    %417 = vmatprep.subr.mxu0 0.0
    %418 = vmatpush1.msra.mxu0 0.0
    %419 = vmatprep.subr.mxu0 0.0
    %420 = vmatpush1.msra.mxu0 0.0
    %421 = vmatprep.subr.mxu0 0.0
    %422 = vmatpush1.msra.mxu0 0.0
    %423 = vmatprep.subr.mxu0 0.0
    %424 = vmatpush1.msra.mxu0 0.0
    %425 = vmatprep.subr.mxu0 0.0
    %426 = vmatpush1.msra.mxu0 0.0
    %427 = vmatprep.subr.mxu0 0.0
    %428 = vmatpush1.msra.mxu0 0.0
    %429 = vmatprep.subr.mxu0 0.0
    %430 = vmatpush1.msra.mxu0 0.0
    %431 = vmatprep.subr.mxu0 0.0
    %432 = vmatpush1.msra.mxu0 0.0
    %433 = vmatprep.subr.mxu0 0.0
    %434 = vmatpush1.msra.mxu0 0.0
    %435 = vmatprep.subr.mxu0 0.0
    %436 = vmatpush1.msra.mxu0 0.0
    %437 = vmatprep.subr.mxu0 0.0
    %438 = vmatpush1.msra.mxu0 0.0
    %439 = vmatprep.subr.mxu0 0.0
    %440 = vmatpush1.msra.mxu0 0.0
    %441 = vmatprep.subr.mxu0 0.0
    %442 = vmatpush1.msra.mxu0 0.0
    %443 = vmatprep.subr.mxu0 0.0
    %444 = vmatpush1.msra.mxu0 0.0
    %445 = vmatprep.subr.mxu0 0.0
    %446 = vmatpush1.msra.mxu0 0.0
    %447 = vmatprep.subr.mxu0 0.0
    %448 = vmatpush1.msra.mxu0 0.0
    %449 = vmatprep.mubr.f32.mxu0 0.0
    %450 = vmatmul.mubr.f32.gmra.mrb[0].mxu0 %v383
    %v451 = vpop.f32.mrb[0].mxu0
    %v452 = vadd.f32 %v58, %v451
    %v453 = vpop.f32.mrb[0].mxu0
    %454 = vdwg.mxu0
    %v455 = vadd.f32 %v382, %v452
    %v456 = vsub.f32 0.0, %v455
    %v457 = vmul.f32 %v456, 1.442695
    %v458 = vpow.pop %v457
    %v459 = vadd.f32 %v458, 1.0
    %v460 = vrcp.pop %v459
    %v461 = vmul.f32 1.0, %v460
    %463 = vrot.lane.b32.xlu0 %v452, 96
    %v464 = vpop.permute.xlu0 %463
    %v466 = vmul.f32 %v461, %v464
    %468 = vrot.lane.b32.xlu0 %v466, 32
    %v469 = vpop.permute.xlu0 %468
    %v471 = vadd.f32 %v382, %v469
    %v472 = vtanh.pop %v471
    %v473 = vsub.f32 1.0, %v461
    %475 = vrot.lane.b32.xlu0 %v472, 112
    %v476 = vpop.permute.xlu0 %475
    %v478 = vmul.f32 %v473, %v476
    %v479 = vmul.f32 %v461, %v374
    %v480 = vadd.f32 %v478, %v479
    %482 = vrot.lane.b32.xlu0 %v480, 112
    %v483 = vpop.permute.xlu0 %482
    %s485 = scalar_lea.vmem [#allocation8], 12
    %486 = vst.msk [vmem:[%s485] sm:$0xf] %vm167, %v483
    %s487 = scalar_lea.vmem [#allocation3], 16
    %v488 = vld [vmem:[%s487] sm:$0xf]
    %v489 = vsel %vm60, %v483, 0
    %491 = vmatprep.subr.mxu0 0.0
    %492 = vmatpush1.msra.mxu0 %v49
    %493 = vmatprep.subr.mxu0 0.0
    %494 = vmatpush1.msra.mxu0 %v50
    %495 = vmatprep.subr.mxu0 0.0
    %496 = vmatpush1.msra.mxu0 0.0
    %497 = vmatprep.subr.mxu0 0.0
    %498 = vmatpush1.msra.mxu0 0.0
    %499 = vmatprep.subr.mxu0 0.0
    %500 = vmatpush1.msra.mxu0 0.0
    %501 = vmatprep.subr.mxu0 0.0
    %502 = vmatpush1.msra.mxu0 0.0
    %503 = vmatprep.subr.mxu0 0.0
    %504 = vmatpush1.msra.mxu0 0.0
    %505 = vmatprep.subr.mxu0 0.0
    %506 = vmatpush1.msra.mxu0 0.0
    %507 = vmatprep.subr.mxu0 0.0
    %508 = vmatpush1.msra.mxu0 0.0
    %509 = vmatprep.subr.mxu0 0.0
    %510 = vmatpush1.msra.mxu0 0.0
    %511 = vmatprep.subr.mxu0 0.0
    %512 = vmatpush1.msra.mxu0 0.0
    %513 = vmatprep.subr.mxu0 0.0
    %514 = vmatpush1.msra.mxu0 0.0
    %515 = vmatprep.subr.mxu0 0.0
    %516 = vmatpush1.msra.mxu0 0.0
    %517 = vmatprep.subr.mxu0 0.0
    %518 = vmatpush1.msra.mxu0 0.0
    %519 = vmatprep.subr.mxu0 0.0
    %520 = vmatpush1.msra.mxu0 0.0
    %521 = vmatprep.subr.mxu0 0.0
    %522 = vmatpush1.msra.mxu0 0.0
    %523 = vmatprep.subr.mxu0 0.0
    %524 = vmatpush1.msra.mxu0 0.0
    %525 = vmatprep.subr.mxu0 0.0
    %526 = vmatpush1.msra.mxu0 0.0
    %527 = vmatprep.subr.mxu0 0.0
    %528 = vmatpush1.msra.mxu0 0.0
    %529 = vmatprep.subr.mxu0 0.0
    %530 = vmatpush1.msra.mxu0 0.0
    %531 = vmatprep.subr.mxu0 0.0
    %532 = vmatpush1.msra.mxu0 0.0
    %533 = vmatprep.subr.mxu0 0.0
    %534 = vmatpush1.msra.mxu0 0.0
    %535 = vmatprep.subr.mxu0 0.0
    %536 = vmatpush1.msra.mxu0 0.0
    %537 = vmatprep.subr.mxu0 0.0
    %538 = vmatpush1.msra.mxu0 0.0
    %539 = vmatprep.subr.mxu0 0.0
    %540 = vmatpush1.msra.mxu0 0.0
    %541 = vmatprep.subr.mxu0 0.0
    %542 = vmatpush1.msra.mxu0 0.0
    %543 = vmatprep.subr.mxu0 0.0
    %544 = vmatpush1.msra.mxu0 0.0
    %545 = vmatprep.subr.mxu0 0.0
    %546 = vmatpush1.msra.mxu0 0.0
    %547 = vmatprep.subr.mxu0 0.0
    %548 = vmatpush1.msra.mxu0 0.0
    %549 = vmatprep.subr.mxu0 0.0
    %550 = vmatpush1.msra.mxu0 0.0
    %551 = vmatprep.subr.mxu0 0.0
    %552 = vmatpush1.msra.mxu0 0.0
    %553 = vmatprep.subr.mxu0 0.0
    %554 = vmatpush1.msra.mxu0 0.0
    %555 = vmatprep.mubr.f32.mxu0 0.0
    %556 = vmatmul.mubr.f32.gmra.mrb[0].mxu0 %v489
    %v557 = vpop.f32.mrb[0].mxu0
    %v558 = vadd.f32 %v58, %v557
    %v559 = vpop.f32.mrb[0].mxu0
    %560 = vdwg.mxu0
    %v561 = vadd.f32 %v488, %v558
    %v562 = vsub.f32 0.0, %v561
    %v563 = vmul.f32 %v562, 1.442695
    %v564 = vpow.pop %v563
    %v565 = vadd.f32 %v564, 1.0
    %v566 = vrcp.pop %v565
    %v567 = vmul.f32 1.0, %v566
    %569 = vrot.lane.b32.xlu0 %v558, 96
    %v570 = vpop.permute.xlu0 %569
    %v572 = vmul.f32 %v567, %v570
    %574 = vrot.lane.b32.xlu0 %v572, 32
    %v575 = vpop.permute.xlu0 %574
    %v577 = vadd.f32 %v488, %v575
    %v578 = vtanh.pop %v577
    %v579 = vsub.f32 1.0, %v567
    %581 = vrot.lane.b32.xlu0 %v578, 112
    %v582 = vpop.permute.xlu0 %581
    %v584 = vmul.f32 %v579, %v582
    %v585 = vmul.f32 %v567, %v480
    %v586 = vadd.f32 %v584, %v585
    %588 = vrot.lane.b32.xlu0 %v586, 112
    %v589 = vpop.permute.xlu0 %588
    %s591 = scalar_lea.vmem [#allocation8], 16
    %592 = vst.msk [vmem:[%s591] sm:$0xf] %vm167, %v589
    %s593 = scalar_lea.vmem [#allocation3], 20
    %v594 = vld [vmem:[%s593] sm:$0xf]
    %v595 = vsel %vm60, %v589, 0
    %597 = vmatprep.subr.mxu0 0.0
    %598 = vmatpush1.msra.mxu0 %v49
    %599 = vmatprep.subr.mxu0 0.0
    %600 = vmatpush1.msra.mxu0 %v50
    %601 = vmatprep.subr.mxu0 0.0
    %602 = vmatpush1.msra.mxu0 0.0
    %603 = vmatprep.subr.mxu0 0.0
    %604 = vmatpush1.msra.mxu0 0.0
    %605 = vmatprep.subr.mxu0 0.0
    %606 = vmatpush1.msra.mxu0 0.0
    %607 = vmatprep.subr.mxu0 0.0
    %608 = vmatpush1.msra.mxu0 0.0
    %609 = vmatprep.subr.mxu0 0.0
    %610 = vmatpush1.msra.mxu0 0.0
    %611 = vmatprep.subr.mxu0 0.0
    %612 = vmatpush1.msra.mxu0 0.0
    %613 = vmatprep.subr.mxu0 0.0
    %614 = vmatpush1.msra.mxu0 0.0
    %615 = vmatprep.subr.mxu0 0.0
    %616 = vmatpush1.msra.mxu0 0.0
    %617 = vmatprep.subr.mxu0 0.0
    %618 = vmatpush1.msra.mxu0 0.0
    %619 = vmatprep.subr.mxu0 0.0
    %620 = vmatpush1.msra.mxu0 0.0
    %621 = vmatprep.subr.mxu0 0.0
    %622 = vmatpush1.msra.mxu0 0.0
    %623 = vmatprep.subr.mxu0 0.0
    %624 = vmatpush1.msra.mxu0 0.0
    %625 = vmatprep.subr.mxu0 0.0
    %626 = vmatpush1.msra.mxu0 0.0
    %627 = vmatprep.subr.mxu0 0.0
    %628 = vmatpush1.msra.mxu0 0.0
    %629 = vmatprep.subr.mxu0 0.0
    %630 = vmatpush1.msra.mxu0 0.0
    %631 = vmatprep.subr.mxu0 0.0
    %632 = vmatpush1.msra.mxu0 0.0
    %633 = vmatprep.subr.mxu0 0.0
    %634 = vmatpush1.msra.mxu0 0.0
    %635 = vmatprep.subr.mxu0 0.0
    %636 = vmatpush1.msra.mxu0 0.0
    %637 = vmatprep.subr.mxu0 0.0
    %638 = vmatpush1.msra.mxu0 0.0
    %639 = vmatprep.subr.mxu0 0.0
    %640 = vmatpush1.msra.mxu0 0.0
    %641 = vmatprep.subr.mxu0 0.0
    %642 = vmatpush1.msra.mxu0 0.0
    %643 = vmatprep.subr.mxu0 0.0
    %644 = vmatpush1.msra.mxu0 0.0
    %645 = vmatprep.subr.mxu0 0.0
    %646 = vmatpush1.msra.mxu0 0.0
    %647 = vmatprep.subr.mxu0 0.0
    %648 = vmatpush1.msra.mxu0 0.0
    %649 = vmatprep.subr.mxu0 0.0
    %650 = vmatpush1.msra.mxu0 0.0
    %651 = vmatprep.subr.mxu0 0.0
    %652 = vmatpush1.msra.mxu0 0.0
    %653 = vmatprep.subr.mxu0 0.0
    %654 = vmatpush1.msra.mxu0 0.0
    %655 = vmatprep.subr.mxu0 0.0
    %656 = vmatpush1.msra.mxu0 0.0
    %657 = vmatprep.subr.mxu0 0.0
    %658 = vmatpush1.msra.mxu0 0.0
    %659 = vmatprep.subr.mxu0 0.0
    %660 = vmatpush1.msra.mxu0 0.0
    %661 = vmatprep.mubr.f32.mxu0 0.0
    %662 = vmatmul.mubr.f32.gmra.mrb[0].mxu0 %v595
    %v663 = vpop.f32.mrb[0].mxu0
    %v664 = vadd.f32 %v58, %v663
    %v665 = vpop.f32.mrb[0].mxu0
    %666 = vdwg.mxu0
    %v667 = vadd.f32 %v594, %v664
    %v668 = vsub.f32 0.0, %v667
    %v669 = vmul.f32 %v668, 1.442695
    %v670 = vpow.pop %v669
    %v671 = vadd.f32 %v670, 1.0
    %v672 = vrcp.pop %v671
    %v673 = vmul.f32 1.0, %v672
    %675 = vrot.lane.b32.xlu0 %v664, 96
    %v676 = vpop.permute.xlu0 %675
    %v678 = vmul.f32 %v673, %v676
    %680 = vrot.lane.b32.xlu0 %v678, 32
    %v681 = vpop.permute.xlu0 %680
    %v683 = vadd.f32 %v594, %v681
    %v684 = vtanh.pop %v683
    %v685 = vsub.f32 1.0, %v673
    %687 = vrot.lane.b32.xlu0 %v684, 112
    %v688 = vpop.permute.xlu0 %687
    %v690 = vmul.f32 %v685, %v688
    %v691 = vmul.f32 %v673, %v586
    %v692 = vadd.f32 %v690, %v691
    %694 = vrot.lane.b32.xlu0 %v692, 112
    %v695 = vpop.permute.xlu0 %694
    %s697 = scalar_lea.vmem [#allocation8], 20
    %698 = vst.msk [vmem:[%s697] sm:$0xf] %vm167, %v695
    %s699 = scalar_lea.vmem [#allocation3], 24
    %v700 = vld [vmem:[%s699] sm:$0xf]
    %v701 = vsel %vm60, %v695, 0
    %703 = vmatprep.subr.mxu0 0.0
    %704 = vmatpush1.msra.mxu0 %v49
    %705 = vmatprep.subr.mxu0 0.0
    %706 = vmatpush1.msra.mxu0 %v50
    %707 = vmatprep.subr.mxu0 0.0
    %708 = vmatpush1.msra.mxu0 0.0
    %709 = vmatprep.subr.mxu0 0.0
    %710 = vmatpush1.msra.mxu0 0.0
    %711 = vmatprep.subr.mxu0 0.0
    %712 = vmatpush1.msra.mxu0 0.0
    %713 = vmatprep.subr.mxu0 0.0
    %714 = vmatpush1.msra.mxu0 0.0
    %715 = vmatprep.subr.mxu0 0.0
    %716 = vmatpush1.msra.mxu0 0.0
    %717 = vmatprep.subr.mxu0 0.0
    %718 = vmatpush1.msra.mxu0 0.0
    %719 = vmatprep.subr.mxu0 0.0
    %720 = vmatpush1.msra.mxu0 0.0
    %721 = vmatprep.subr.mxu0 0.0
    %722 = vmatpush1.msra.mxu0 0.0
    %723 = vmatprep.subr.mxu0 0.0
    %724 = vmatpush1.msra.mxu0 0.0
    %725 = vmatprep.subr.mxu0 0.0
    %726 = vmatpush1.msra.mxu0 0.0
    %727 = vmatprep.subr.mxu0 0.0
    %728 = vmatpush1.msra.mxu0 0.0
    %729 = vmatprep.subr.mxu0 0.0
    %730 = vmatpush1.msra.mxu0 0.0
    %731 = vmatprep.subr.mxu0 0.0
    %732 = vmatpush1.msra.mxu0 0.0
    %733 = vmatprep.subr.mxu0 0.0
    %734 = vmatpush1.msra.mxu0 0.0
    %735 = vmatprep.subr.mxu0 0.0
    %736 = vmatpush1.msra.mxu0 0.0
    %737 = vmatprep.subr.mxu0 0.0
    %738 = vmatpush1.msra.mxu0 0.0
    %739 = vmatprep.subr.mxu0 0.0
    %740 = vmatpush1.msra.mxu0 0.0
    %741 = vmatprep.subr.mxu0 0.0
    %742 = vmatpush1.msra.mxu0 0.0
    %743 = vmatprep.subr.mxu0 0.0
    %744 = vmatpush1.msra.mxu0 0.0
    %745 = vmatprep.subr.mxu0 0.0
    %746 = vmatpush1.msra.mxu0 0.0
    %747 = vmatprep.subr.mxu0 0.0
    %748 = vmatpush1.msra.mxu0 0.0
    %749 = vmatprep.subr.mxu0 0.0
    %750 = vmatpush1.msra.mxu0 0.0
    %751 = vmatprep.subr.mxu0 0.0
    %752 = vmatpush1.msra.mxu0 0.0
    %753 = vmatprep.subr.mxu0 0.0
    %754 = vmatpush1.msra.mxu0 0.0
    %755 = vmatprep.subr.mxu0 0.0
    %756 = vmatpush1.msra.mxu0 0.0
    %757 = vmatprep.subr.mxu0 0.0
    %758 = vmatpush1.msra.mxu0 0.0
    %759 = vmatprep.subr.mxu0 0.0
    %760 = vmatpush1.msra.mxu0 0.0
    %761 = vmatprep.subr.mxu0 0.0
    %762 = vmatpush1.msra.mxu0 0.0
    %763 = vmatprep.subr.mxu0 0.0
    %764 = vmatpush1.msra.mxu0 0.0
    %765 = vmatprep.subr.mxu0 0.0
    %766 = vmatpush1.msra.mxu0 0.0
    %767 = vmatprep.mubr.f32.mxu0 0.0
    %768 = vmatmul.mubr.f32.gmra.mrb[0].mxu0 %v701
    %v769 = vpop.f32.mrb[0].mxu0
    %v770 = vadd.f32 %v58, %v769
    %v771 = vpop.f32.mrb[0].mxu0
    %772 = vdwg.mxu0
    %v773 = vadd.f32 %v700, %v770
    %v774 = vsub.f32 0.0, %v773
    %v775 = vmul.f32 %v774, 1.442695
    %v776 = vpow.pop %v775
    %v777 = vadd.f32 %v776, 1.0
    %v778 = vrcp.pop %v777
    %v779 = vmul.f32 1.0, %v778
    %781 = vrot.lane.b32.xlu0 %v770, 96
    %v782 = vpop.permute.xlu0 %781
    %v784 = vmul.f32 %v779, %v782
    %786 = vrot.lane.b32.xlu0 %v784, 32
    %v787 = vpop.permute.xlu0 %786
    %v789 = vadd.f32 %v700, %v787
    %v790 = vtanh.pop %v789
    %v791 = vsub.f32 1.0, %v779
    %793 = vrot.lane.b32.xlu0 %v790, 112
    %v794 = vpop.permute.xlu0 %793
    %v796 = vmul.f32 %v791, %v794
    %v797 = vmul.f32 %v779, %v692
    %v798 = vadd.f32 %v796, %v797
    %800 = vrot.lane.b32.xlu0 %v798, 112
    %v801 = vpop.permute.xlu0 %800
    %s803 = scalar_lea.vmem [#allocation8], 24
    %804 = vst.msk [vmem:[%s803] sm:$0xf] %vm167, %v801
    %s805 = scalar_lea.vmem [#allocation3], 28
    %v806 = vld [vmem:[%s805] sm:$0xf]
    %v807 = vsel %vm60, %v801, 0
    %809 = vmatprep.subr.mxu0 0.0
    %810 = vmatpush1.msra.mxu0 %v49
    %811 = vmatprep.subr.mxu0 0.0
    %812 = vmatpush1.msra.mxu0 %v50
    %813 = vmatprep.subr.mxu0 0.0
    %814 = vmatpush1.msra.mxu0 0.0
    %815 = vmatprep.subr.mxu0 0.0
    %816 = vmatpush1.msra.mxu0 0.0
    %817 = vmatprep.subr.mxu0 0.0
    %818 = vmatpush1.msra.mxu0 0.0
    %819 = vmatprep.subr.mxu0 0.0
    %820 = vmatpush1.msra.mxu0 0.0
    %821 = vmatprep.subr.mxu0 0.0
    %822 = vmatpush1.msra.mxu0 0.0
    %823 = vmatprep.subr.mxu0 0.0
    %824 = vmatpush1.msra.mxu0 0.0
    %825 = vmatprep.subr.mxu0 0.0
    %826 = vmatpush1.msra.mxu0 0.0
    %827 = vmatprep.subr.mxu0 0.0
    %828 = vmatpush1.msra.mxu0 0.0
    %829 = vmatprep.subr.mxu0 0.0
    %830 = vmatpush1.msra.mxu0 0.0
    %831 = vmatprep.subr.mxu0 0.0
    %832 = vmatpush1.msra.mxu0 0.0
    %833 = vmatprep.subr.mxu0 0.0
    %834 = vmatpush1.msra.mxu0 0.0
    %835 = vmatprep.subr.mxu0 0.0
    %836 = vmatpush1.msra.mxu0 0.0
    %837 = vmatprep.subr.mxu0 0.0
    %838 = vmatpush1.msra.mxu0 0.0
    %839 = vmatprep.subr.mxu0 0.0
    %840 = vmatpush1.msra.mxu0 0.0
    %841 = vmatprep.subr.mxu0 0.0
    %842 = vmatpush1.msra.mxu0 0.0
    %843 = vmatprep.subr.mxu0 0.0
    %844 = vmatpush1.msra.mxu0 0.0
    %845 = vmatprep.subr.mxu0 0.0
    %846 = vmatpush1.msra.mxu0 0.0
    %847 = vmatprep.subr.mxu0 0.0
    %848 = vmatpush1.msra.mxu0 0.0
    %849 = vmatprep.subr.mxu0 0.0
    %850 = vmatpush1.msra.mxu0 0.0
    %851 = vmatprep.subr.mxu0 0.0
    %852 = vmatpush1.msra.mxu0 0.0
    %853 = vmatprep.subr.mxu0 0.0
    %854 = vmatpush1.msra.mxu0 0.0
    %855 = vmatprep.subr.mxu0 0.0
    %856 = vmatpush1.msra.mxu0 0.0
    %857 = vmatprep.subr.mxu0 0.0
    %858 = vmatpush1.msra.mxu0 0.0
    %859 = vmatprep.subr.mxu0 0.0
    %860 = vmatpush1.msra.mxu0 0.0
    %861 = vmatprep.subr.mxu0 0.0
    %862 = vmatpush1.msra.mxu0 0.0
    %863 = vmatprep.subr.mxu0 0.0
    %864 = vmatpush1.msra.mxu0 0.0
    %865 = vmatprep.subr.mxu0 0.0
    %866 = vmatpush1.msra.mxu0 0.0
    %867 = vmatprep.subr.mxu0 0.0
    %868 = vmatpush1.msra.mxu0 0.0
    %869 = vmatprep.subr.mxu0 0.0
    %870 = vmatpush1.msra.mxu0 0.0
    %871 = vmatprep.subr.mxu0 0.0
    %872 = vmatpush1.msra.mxu0 0.0
    %873 = vmatprep.mubr.f32.mxu0 0.0
    %874 = vmatmul.mubr.f32.gmra.mrb[0].mxu0 %v807
    %v875 = vpop.f32.mrb[0].mxu0
    %v876 = vadd.f32 %v58, %v875
    %v877 = vpop.f32.mrb[0].mxu0
    %878 = vdwg.mxu0
    %v879 = vadd.f32 %v806, %v876
    %v880 = vsub.f32 0.0, %v879
    %v881 = vmul.f32 %v880, 1.442695
    %v882 = vpow.pop %v881
    %v883 = vadd.f32 %v882, 1.0
    %v884 = vrcp.pop %v883
    %v885 = vmul.f32 1.0, %v884
    %887 = vrot.lane.b32.xlu0 %v876, 96
    %v888 = vpop.permute.xlu0 %887
    %v890 = vmul.f32 %v885, %v888
    %892 = vrot.lane.b32.xlu0 %v890, 32
    %v893 = vpop.permute.xlu0 %892
    %v895 = vadd.f32 %v806, %v893
    %v896 = vtanh.pop %v895
    %v897 = vsub.f32 1.0, %v885
    %899 = vrot.lane.b32.xlu0 %v896, 112
    %v900 = vpop.permute.xlu0 %899
    %v902 = vmul.f32 %v897, %v900
    %v903 = vmul.f32 %v885, %v798
    %v904 = vadd.f32 %v902, %v903
    %906 = vrot.lane.b32.xlu0 %v904, 112
    %v907 = vpop.permute.xlu0 %906
    %s909 = scalar_lea.vmem [#allocation8], 28
    %910 = vst.msk [vmem:[%s909] sm:$0xf] %vm167, %v907
    %911 = vst.msk [vmem:[#allocation2] sm:$0xf] %vm167, %v907
    // Predicated region
    $region26: #{tpu_custom_call.1} parent=1 // pred_check
      _
    $region27: #{tpu_custom_call.1} parent=1 // pred_check_branch
      %913 = sbr.rel (0) target = $region29
    $region28: #{tpu_custom_call.1} parent=1 // pred_region
      %s915 = ssub.s32 512, 512
      %916 = vsyncadd [#allocation5], %s915
      %s917 = sshll.u32 [#allocation8], 4
      %s918 = int_to_ptr.vmem [resolvable:$true] %s917
      %923 = dma.vmem_to_hbm [thread:$0]  %s918, 512, %s3, [#allocation5], 64, 64, 4
    $region29: #{tpu_custom_call.1} parent=1 // pred_fallthru
      _
    // Predicated region
    $region30: #{tpu_custom_call.1} parent=1 // pred_check
      _
    $region31: #{tpu_custom_call.1} parent=1 // pred_check_branch
      %925 = sbr.rel (0) target = $region33
    $region32: #{tpu_custom_call.1} parent=1 // pred_region
      %926 = dma.done [#allocation5], 512
    $region33: #{tpu_custom_call.1} parent=1 // pred_fallthru
      _
    %927 = vsyncpa [#allocation4], 1
    %928 = vsyncpa [#allocation7], 1
    %929 = vsyncpa [#allocation5], 1

</llo_original>
